<compile_context>
chip_gen: v5e
topology: v5e:2x2
jax: 0.10.0
libtpu: 0.0.40
codegen_flags: <defaults>
</compile_context>

<pallas_src>
import functools

import jax
import jax.numpy as jnp
from jax.experimental import pallas as pl
from jax.experimental.pallas import tpu as pltpu


# ---------------------------------------------------------------------------
# Phase 1: gating matmul, softmax, top-1/top-2 selection, per-tile stats.
# ---------------------------------------------------------------------------
def _gating_phase1_kernel(x_ref, w_ref, packed_ref, stats_ref):
    Ts = x_ref.shape[0]
    E = w_ref.shape[1]

    # Gating linear layer on the MXU (bf16 inputs, f32 accumulation).
    logits = jnp.dot(x_ref[...], w_ref[...],
                     preferred_element_type=jnp.float32)              # (Ts, E)

    # Softmax over experts.  Exact divide: l_aux depends on these values.
    max1 = jnp.max(logits, axis=1, keepdims=True)                      # (Ts, 1)
    e = jnp.exp(logits - max1)
    gates = e / jnp.sum(e, axis=1, keepdims=True)

    iota_e = jax.lax.broadcasted_iota(jnp.int32, (Ts, E), 1)

    # Top-1 expert: first index attaining the max (matches torch.argmax).
    idx1 = jnp.min(jnp.where(logits == max1, iota_e, E), axis=1, keepdims=True)
    b1 = iota_e == idx1
    # Top-2 expert: mask top-1 with -inf, argmax again.
    logits2 = jnp.where(b1, -jnp.inf, logits)
    max2 = jnp.max(logits2, axis=1, keepdims=True)
    idx2 = jnp.min(jnp.where(logits2 == max2, iota_e, E), axis=1, keepdims=True)
    b2 = iota_e == idx2

    mask1 = b1.astype(jnp.float32)
    mask2 = b2.astype(jnp.float32)
    g1 = jnp.sum(gates * mask1, axis=1, keepdims=True)                 # (Ts, 1)
    g2 = jnp.sum(gates * mask2, axis=1, keepdims=True)

    # Compact per-token intermediate: columns [idx1, idx2, g1, g2], built with
    # broadcasting selects (no concatenate), stored as a single (Ts, 4) tile.
    # TODO(synk): a transposed (4, S) layout with tokens on lanes would give
    # fully unmasked lane-dense stores; kept untransposed for lowering safety.
    col4 = jax.lax.broadcasted_iota(jnp.int32, (Ts, 4), 1)
    packed_ref[...] = jnp.where(
        col4 == 0, idx1.astype(jnp.float32),
        jnp.where(col4 == 1, idx2.astype(jnp.float32),
                  jnp.where(col4 == 2, g1, g2)))

    # Per-tile per-expert statistics (pre-capacity, as in the reference):
    #   row 0: top-1 counts, row 1: top-2 counts, row 2: column-sum of gates.
    c1 = jnp.sum(mask1, axis=0, keepdims=True)                         # (1, E)
    c2 = jnp.sum(mask2, axis=0, keepdims=True)
    gs = jnp.sum(gates, axis=0, keepdims=True)
    row3 = jax.lax.broadcasted_iota(jnp.int32, (1, 3, E), 1)
    stats_ref[...] = jnp.where(row3 == 0, c1, jnp.where(row3 == 1, c2, gs))


# ---------------------------------------------------------------------------
# Phase 2: within-tile cumsum + global offsets, capacity masking, renorm,
# lane-dense combine weights and dispatch mask.
# ---------------------------------------------------------------------------
def _gating_phase2_kernel(packed_ref, off_ref, tri_ref, combine_ref,
                          dispatch_ref, *, capacity):
    Ts = packed_ref.shape[0]
    E = off_ref.shape[2]
    C_pad = combine_ref.shape[1]

    packed = packed_ref[...]                                           # (Ts, 4)
    idx1 = packed[:, 0:1].astype(jnp.int32)
    idx2 = packed[:, 1:2].astype(jnp.int32)
    g1 = packed[:, 2:3]
    g2 = packed[:, 3:4]

    iota_e = jax.lax.broadcasted_iota(jnp.int32, (Ts, E), 1)
    b1 = iota_e == idx1
    b2 = iota_e == idx2
    m1b = b1.astype(jnp.bfloat16)
    m2b = b2.astype(jnp.bfloat16)

    # Within-tile inclusive token cumsum as one small bf16 triangular matmul.
    # tri has a constant index_map -> fetched once and kept resident in VMEM.
    tri = tri_ref[...]                                                 # (Ts, Ts)
    loc1 = jnp.dot(tri, m1b, preferred_element_type=jnp.float32) - 1.0
    loc2 = jnp.dot(tri, m2b, preferred_element_type=jnp.float32) - 1.0

    offs = off_ref[0]                                                  # (2, E)
    locations1 = loc1 + offs[0:1, :]
    locations2 = loc2 + offs[1:2, :]   # already includes global sum(mask1)

    cap = jnp.float32(capacity)
    mask1 = jnp.where(b1 & (locations1 < cap), 1.0, 0.0)
    mask2 = jnp.where(b2 & (locations2 < cap), 1.0, 0.0)

    keep1 = jnp.sum(mask1, axis=1, keepdims=True)                      # 0 or 1
    keep2 = jnp.sum(mask2, axis=1, keepdims=True)

    gates1_s = g1 * keep1
    gates2_s = g2 * keep2
    denom = jnp.maximum(gates1_s + gates2_s,
                        jnp.float32(jnp.finfo(jnp.float32).eps))
    gates1_s = gates1_s / denom          # (Ts,1): exact divide, negligible cost
    gates2_s = gates2_s / denom

    loc1_s = jnp.sum(locations1 * mask1, axis=1, keepdims=True).astype(jnp.int32)
    loc2_s = jnp.sum(locations2 * mask2, axis=1, keepdims=True).astype(jnp.int32)

    # Lane-dense (C_pad % 128 == 0) combine/dispatch build: int32 compares and
    # selects only (no float one-hot casts / multiplies over (Ts, C_pad)).
    iota_c = jax.lax.broadcasted_iota(jnp.int32, (Ts, C_pad), 1)
    zero = jnp.float32(0.0)
    combine = (jnp.where(iota_c == loc1_s, gates1_s, zero)
               + jnp.where(iota_c == loc2_s, gates2_s, zero))          # f32

    combine_ref[...] = combine.astype(combine_ref.dtype)
    # Dispatch mask from the f32 combine (matches `combine_weights.bool()`).
    dispatch_ref[...] = (combine != zero).astype(dispatch_ref.dtype)


# ---------------------------------------------------------------------------
# Tile sizing: account for the real phase-2 footprint (tri, (Ts,C_pad) temps,
# double-buffered outputs), keep T >= 2 when possible (v7x megacore).
# ---------------------------------------------------------------------------
def _phase_footprint(ts, M, E, C_pad, out_itemsize):
    p1 = (2 * ts * M * 2            # x tile, double-buffered bf16
          + 2 * M * E * 2           # weights
          + 2 * ts * 4 * 4          # packed output
          + 8 * ts * E * 4)         # (Ts, E) elementwise temps
    p2 = (2 * ts * ts * 2           # resident tri (count 2 buffers, worst case)
          + 2 * ts * 4 * 4          # packed input
          + 2 * ts * C_pad * out_itemsize   # combine output
          + 2 * ts * C_pad * 2      # dispatch output (bf16)
          + 5 * ts * C_pad * 4      # iota / select temps / f32 combine
          + 12 * ts * E * 4)        # (Ts, E) temps
    return max(p1, p2)


def _pick_token_tile(S, M, E, C_pad, out_itemsize, budget=24 << 20):
    if S % 128 != 0:
        # TODO(synk): pad S / masked tail tile instead of one S-sized tile.
        return S
    candidates = [ts for ts in (512, 256, 128) if S % ts == 0]
    if not candidates:
        return S
    fitting = [ts for ts in candidates
               if _phase_footprint(ts, M, E, C_pad, out_itemsize) <= budget]
    pool = fitting if fitting else [min(candidates)]
    multi = [ts for ts in pool if S // ts >= 2]     # keep both TCs busy on v7x
    return max(multi) if multi else max(pool)


def top2_gating(x, w, *, token_tile=None):
    """x: (S, M), w: (M, E) -> (l_aux, combine_weights (S,1,C), dispatch_mask)."""
    S, M = x.shape
    Mw, E = w.shape
    assert M == Mw and E >= 2
    C = 2 * S // E                                   # capacity (as in reference)
    assert C >= 1
    C_pad = max(128, ((C + 127) // 128) * 128)       # lane-dense outputs

    out_dtype = x.dtype
    out_itemsize = jnp.dtype(out_dtype).itemsize

    Ts = token_tile if token_tile is not None else _pick_token_tile(
        S, M, E, C_pad, out_itemsize)
    assert S % Ts == 0
    T = S // Ts

    fp = _phase_footprint(Ts, M, E, C_pad, out_itemsize)
    vmem_limit = int(min(max(32 << 20, 2 * fp), 48 << 20))
    cparams = pltpu.CompilerParams(
        dimension_semantics=("parallel",),
        vmem_limit_bytes=vmem_limit,
    )

    # bf16 MXU inputs (halves HBM traffic for x; accumulation stays f32).
    x_bf = x.astype(jnp.bfloat16)
    w_bf = w.astype(jnp.bfloat16)

    # ---------------- phase 1: token-parallel ----------------
    packed, stats = pl.pallas_call(
        _gating_phase1_kernel,
        grid=(T,),
        in_specs=[
            pl.BlockSpec((Ts, M), lambda t: (t, 0)),
            pl.BlockSpec((M, E), lambda t: (0, 0)),
        ],
        out_specs=(
            pl.BlockSpec((Ts, 4), lambda t: (t, 0)),
            pl.BlockSpec((1, 3, E), lambda t: (t, 0, 0)),
        ),
        out_shape=(
            jax.ShapeDtypeStruct((S, 4), jnp.float32),
            jax.ShapeDtypeStruct((T, 3, E), jnp.float32),
        ),
        compiler_params=cparams,
    )(x_bf, w_bf)

    # -------- tiny (T, E) glue: cross-tile prefix offsets + l_aux ----------
    counts1 = stats[:, 0, :]                                      # (T, E)
    counts2 = stats[:, 1, :]
    gsum = stats[:, 2, :]
    total1 = jnp.sum(counts1, axis=0, keepdims=True)              # (1, E)
    off1 = jnp.cumsum(counts1, axis=0) - counts1                  # exclusive
    off2 = jnp.cumsum(counts2, axis=0) - counts2 + total1         # += sum(mask1)
    offsets = jnp.stack([off1, off2], axis=1)                     # (T, 2, E)

    me = jnp.sum(gsum, axis=0) / S
    ce = total1[0] / S
    l_aux = jnp.mean(me * ce)                                     # as in reference

    # Lower-triangular (inclusive cumsum) matrix, resident in phase 2's VMEM.
    tri = (jnp.arange(Ts)[:, None] >= jnp.arange(Ts)[None, :]).astype(jnp.bfloat16)

    # ---------------- phase 2: token-parallel ----------------
    combine_pad, dispatch_pad = pl.pallas_call(
        functools.partial(_gating_phase2_kernel, capacity=C),
        grid=(T,),
        in_specs=[
            pl.BlockSpec((Ts, 4), lambda t: (t, 0)),
            pl.BlockSpec((1, 2, E), lambda t: (t, 0, 0)),
            pl.BlockSpec((Ts, Ts), lambda t: (0, 0)),      # tri: fetched once
        ],
        out_specs=(
            pl.BlockSpec((Ts, C_pad), lambda t: (t, 0)),
            pl.BlockSpec((Ts, C_pad), lambda t: (t, 0)),
        ),
        out_shape=(
            jax.ShapeDtypeStruct((S, C_pad), out_dtype),
            jax.ShapeDtypeStruct((S, C_pad), jnp.bfloat16),
        ),
        compiler_params=cparams,
    )(packed, offsets, tri)

    combine_weights = combine_pad[:, :C].reshape(S, 1, C)
    dispatch_mask = dispatch_pad[:, :C].astype(jnp.bool_).reshape(S, 1, C)
    # TODO(synk): optional single-pallas_call fusion of both phases (keeps the
    # per-token intermediates in VMEM) for small S on v5e/v6e.
    return l_aux.astype(x.dtype), combine_weights, dispatch_mask


if __name__ == "__main__":
    # Small shapes consistent with the module: S tokens, model_dim M, E experts.
    S, M, E = 256, 64, 8          # capacity = 2*256//8 = 64 (padded to 128 lanes)

    key = jax.random.PRNGKey(0)
    kx, kw = jax.random.split(key)
    x = jax.random.normal(kx, (S, M), dtype=jnp.float32)
    w = jax.random.normal(kw, (M, E), dtype=jnp.float32) * 0.1

    # Default tile picker chooses Ts=128 -> T=2: exercises the multi-tile
    # prefix-offset path and the megacore-parallel grid.
    l_aux, combine_weights, dispatch_mask = top2_gating(x, w)
    jax.block_until_ready((l_aux, combine_weights, dispatch_mask))

    C = 2 * S // E
    assert combine_weights.shape == (S, 1, C)
    assert dispatch_mask.shape == (S, 1, C)
    assert dispatch_mask.dtype == jnp.bool_
    assert l_aux.shape == ()
    row_sums = combine_weights.sum(axis=-1)
    assert float(row_sums.max()) <= 1.0 + 1e-3   # renorm keeps per-token mass <= 1
    assert bool(jnp.all((combine_weights > 0) == dispatch_mask))
    print("KERNEL_OK")
</pallas_src>

<mosaic_0001>
module attributes {stable_mosaic.version = 11 : i64} {
  func.func @_gating_phase1_kernel(%arg0: i32, %arg1: memref<128x64xbf16, #tpu.memory_space<vmem>>, %arg2: memref<64x8xbf16, #tpu.memory_space<vmem>>, %arg3: memref<128x4xf32, #tpu.memory_space<vmem>>, %arg4: memref<1x3x8xf32, #tpu.memory_space<vmem>>) attributes {dimension_semantics = [#tpu.dimension_semantics<parallel>], iteration_bounds = array<i64: 2>, scalar_prefetch = 0 : i64, scratch_operands = 0 : i64, tpu.core_type = #tpu.core_type<tc>, window_params = [{transform_indices = @transform_0, window_bounds = array<i64: 128, 64>}, {pipeline_mode = #tpu.pipeline_mode<synchronous>, transform_indices = @transform_1, window_bounds = array<i64: 64, 8>}, {transform_indices = @transform_2, window_bounds = array<i64: 128, 4>}, {transform_indices = @transform_3, window_bounds = array<i64: 1, 3, 8>}]} {
    %c0 = arith.constant 0 : index
    %c0_0 = arith.constant 0 : index
    %0 = vector.load %arg1[%c0, %c0_0] : memref<128x64xbf16, #tpu.memory_space<vmem>>, vector<128x64xbf16>
    %c0_1 = arith.constant 0 : index
    %c0_2 = arith.constant 0 : index
    %1 = vector.load %arg2[%c0_1, %c0_2] : memref<64x8xbf16, #tpu.memory_space<vmem>>, vector<64x8xbf16>
    %cst = arith.constant dense<0.000000e+00> : vector<128x8xf32>
    %2 = tpu.matmul %0, %1, %cst {dimension_numbers = #tpu.dot_dimension_numbers<[1], [0], [0], [1], [0, 0, 1, 1], [], []>} : vector<128x64xbf16>, vector<64x8xbf16>, vector<128x8xf32> -> vector<128x8xf32>
    %cst_3 = arith.constant dense<0xFF800000> : vector<128xf32>
    %3 = vector.multi_reduction <maximumf>, %2, %cst_3 [1] : vector<128x8xf32> to vector<128xf32>
    %4 = vector.shape_cast %3 : vector<128xf32> to vector<128x1xf32>
    %5 = vector.broadcast %4 : vector<128x1xf32> to vector<128x8xf32>
    %6 = arith.subf %2, %5 : vector<128x8xf32>
    %7 = math.exp %6 : vector<128x8xf32>
    %cst_4 = arith.constant dense<0.000000e+00> : vector<128xf32>
    %8 = vector.multi_reduction <add>, %7, %cst_4 [1] : vector<128x8xf32> to vector<128xf32>
    %9 = vector.shape_cast %8 : vector<128xf32> to vector<128x1xf32>
    %10 = vector.broadcast %9 : vector<128x1xf32> to vector<128x8xf32>
    %11 = arith.divf %7, %10 : vector<128x8xf32>
    %12 = tpu.iota {dimensions = array<i32: 1>} : vector<128x8xi32>
    %13 = vector.broadcast %4 : vector<128x1xf32> to vector<128x8xf32>
    %14 = arith.cmpf oeq, %2, %13 : vector<128x8xf32>
    %c8_i32 = arith.constant 8 : i32
    %15 = vector.broadcast %c8_i32 : i32 to vector<128x8xi32>
    %16 = arith.select %14, %12, %15 : vector<128x8xi1>, vector<128x8xi32>
    %cst_5 = arith.constant dense<2147483647> : vector<128xi32>
    %17 = vector.multi_reduction <minsi>, %16, %cst_5 [1] : vector<128x8xi32> to vector<128xi32>
    %18 = vector.shape_cast %17 : vector<128xi32> to vector<128x1xi32>
    %19 = vector.broadcast %18 : vector<128x1xi32> to vector<128x8xi32>
    %20 = arith.cmpi eq, %12, %19 : vector<128x8xi32>
    %cst_6 = arith.constant 0xFF800000 : f32
    %21 = vector.broadcast %cst_6 : f32 to vector<128x8xf32>
    %22 = arith.select %20, %21, %2 : vector<128x8xi1>, vector<128x8xf32>
    %cst_7 = arith.constant dense<0xFF800000> : vector<128xf32>
    %23 = vector.multi_reduction <maximumf>, %22, %cst_7 [1] : vector<128x8xf32> to vector<128xf32>
    %24 = vector.shape_cast %23 : vector<128xf32> to vector<128x1xf32>
    %25 = vector.broadcast %24 : vector<128x1xf32> to vector<128x8xf32>
    %26 = arith.cmpf oeq, %22, %25 : vector<128x8xf32>
    %c8_i32_8 = arith.constant 8 : i32
    %27 = vector.broadcast %c8_i32_8 : i32 to vector<128x8xi32>
    %28 = arith.select %26, %12, %27 : vector<128x8xi1>, vector<128x8xi32>
    %cst_9 = arith.constant dense<2147483647> : vector<128xi32>
    %29 = vector.multi_reduction <minsi>, %28, %cst_9 [1] : vector<128x8xi32> to vector<128xi32>
    %30 = vector.shape_cast %29 : vector<128xi32> to vector<128x1xi32>
    %31 = vector.broadcast %30 : vector<128x1xi32> to vector<128x8xi32>
    %32 = arith.cmpi eq, %12, %31 : vector<128x8xi32>
    %33 = arith.extui %20 : vector<128x8xi1> to vector<128x8xi32>
    %34 = arith.sitofp %33 : vector<128x8xi32> to vector<128x8xf32>
    %35 = arith.extui %32 : vector<128x8xi1> to vector<128x8xi32>
    %36 = arith.sitofp %35 : vector<128x8xi32> to vector<128x8xf32>
    %37 = arith.mulf %11, %34 : vector<128x8xf32>
    %cst_10 = arith.constant dense<0.000000e+00> : vector<128xf32>
    %38 = vector.multi_reduction <add>, %37, %cst_10 [1] : vector<128x8xf32> to vector<128xf32>
    %39 = vector.shape_cast %38 : vector<128xf32> to vector<128x1xf32>
    %40 = arith.mulf %11, %36 : vector<128x8xf32>
    %cst_11 = arith.constant dense<0.000000e+00> : vector<128xf32>
    %41 = vector.multi_reduction <add>, %40, %cst_11 [1] : vector<128x8xf32> to vector<128xf32>
    %42 = vector.shape_cast %41 : vector<128xf32> to vector<128x1xf32>
    %43 = tpu.iota {dimensions = array<i32: 1>} : vector<128x4xi32>
    %c0_i32 = arith.constant 0 : i32
    %44 = vector.broadcast %c0_i32 : i32 to vector<128x4xi32>
    %45 = arith.cmpi eq, %43, %44 : vector<128x4xi32>
    %46 = arith.sitofp %18 : vector<128x1xi32> to vector<128x1xf32>
    %c1_i32 = arith.constant 1 : i32
    %47 = vector.broadcast %c1_i32 : i32 to vector<128x4xi32>
    %48 = arith.cmpi eq, %43, %47 : vector<128x4xi32>
    %49 = arith.sitofp %30 : vector<128x1xi32> to vector<128x1xf32>
    %c2_i32 = arith.constant 2 : i32
    %50 = vector.broadcast %c2_i32 : i32 to vector<128x4xi32>
    %51 = arith.cmpi eq, %43, %50 : vector<128x4xi32>
    %52 = vector.shape_cast %39 : vector<128x1xf32> to vector<128x1xf32>
    %53 = vector.broadcast %52 : vector<128x1xf32> to vector<128x4xf32>
    %54 = vector.shape_cast %42 : vector<128x1xf32> to vector<128x1xf32>
    %55 = vector.broadcast %54 : vector<128x1xf32> to vector<128x4xf32>
    %56 = arith.select %51, %53, %55 : vector<128x4xi1>, vector<128x4xf32>
    %57 = vector.shape_cast %49 : vector<128x1xf32> to vector<128x1xf32>
    %58 = vector.broadcast %57 : vector<128x1xf32> to vector<128x4xf32>
    %59 = arith.select %48, %58, %56 : vector<128x4xi1>, vector<128x4xf32>
    %60 = vector.shape_cast %46 : vector<128x1xf32> to vector<128x1xf32>
    %61 = vector.broadcast %60 : vector<128x1xf32> to vector<128x4xf32>
    %62 = arith.select %45, %61, %59 : vector<128x4xi1>, vector<128x4xf32>
    %c0_12 = arith.constant 0 : index
    %c0_13 = arith.constant 0 : index
    %63 = vector.load %arg3[%c0_12, %c0_13] : memref<128x4xf32, #tpu.memory_space<vmem>>, vector<128x4xf32>
    tpu.vector_store %arg3[%c0_12, %c0_13], %62 {strides = array<i32>} : memref<128x4xf32, #tpu.memory_space<vmem>>, vector<128x4xf32>,
    %cst_14 = arith.constant dense<0.000000e+00> : vector<8xf32>
    %64 = vector.multi_reduction <add>, %34, %cst_14 [0] : vector<128x8xf32> to vector<8xf32>
    %65 = vector.shape_cast %64 : vector<8xf32> to vector<1x8xf32>
    %cst_15 = arith.constant dense<0.000000e+00> : vector<8xf32>
    %66 = vector.multi_reduction <add>, %36, %cst_15 [0] : vector<128x8xf32> to vector<8xf32>
    %67 = vector.shape_cast %66 : vector<8xf32> to vector<1x8xf32>
    %cst_16 = arith.constant dense<0.000000e+00> : vector<8xf32>
    %68 = vector.multi_reduction <add>, %11, %cst_16 [0] : vector<128x8xf32> to vector<8xf32>
    %69 = vector.shape_cast %68 : vector<8xf32> to vector<1x8xf32>
    %70 = tpu.iota {dimensions = array<i32: 1>} : vector<1x3x8xi32>
    %c0_i32_17 = arith.constant 0 : i32
    %71 = vector.broadcast %c0_i32_17 : i32 to vector<1x3x8xi32>
    %72 = arith.cmpi eq, %70, %71 : vector<1x3x8xi32>
    %c1_i32_18 = arith.constant 1 : i32
    %73 = vector.broadcast %c1_i32_18 : i32 to vector<1x3x8xi32>
    %74 = arith.cmpi eq, %70, %73 : vector<1x3x8xi32>
    %75 = vector.shape_cast %67 : vector<1x8xf32> to vector<1x1x8xf32>
    %76 = vector.broadcast %75 : vector<1x1x8xf32> to vector<1x3x8xf32>
    %77 = vector.shape_cast %69 : vector<1x8xf32> to vector<1x1x8xf32>
    %78 = vector.broadcast %77 : vector<1x1x8xf32> to vector<1x3x8xf32>
    %79 = arith.select %74, %76, %78 : vector<1x3x8xi1>, vector<1x3x8xf32>
    %80 = vector.shape_cast %65 : vector<1x8xf32> to vector<1x1x8xf32>
    %81 = vector.broadcast %80 : vector<1x1x8xf32> to vector<1x3x8xf32>
    %82 = arith.select %72, %81, %79 : vector<1x3x8xi1>, vector<1x3x8xf32>
    %c0_19 = arith.constant 0 : index
    %c0_20 = arith.constant 0 : index
    %c0_21 = arith.constant 0 : index
    %83 = vector.load %arg4[%c0_19, %c0_20, %c0_21] : memref<1x3x8xf32, #tpu.memory_space<vmem>>, vector<1x3x8xf32>
    tpu.vector_store %arg4[%c0_19, %c0_20, %c0_21], %82 {strides = array<i32>} : memref<1x3x8xf32, #tpu.memory_space<vmem>>, vector<1x3x8xf32>,
    return
  }
  func.func @transform_0(%arg0: i32) -> (i32, i32) {
    %c0_i32 = arith.constant 0 : i32
    %c0_i32_0 = arith.constant 0 : i32
    return %arg0, %c0_i32 : i32, i32
  }
  func.func @transform_1(%arg0: i32) -> (i32, i32) {
    %c0_i32 = arith.constant 0 : i32
    %c0_i32_0 = arith.constant 0 : i32
    %c0_i32_1 = arith.constant 0 : i32
    return %c0_i32, %c0_i32_0 : i32, i32
  }
  func.func @transform_2(%arg0: i32) -> (i32, i32) {
    %c0_i32 = arith.constant 0 : i32
    %c0_i32_0 = arith.constant 0 : i32
    return %arg0, %c0_i32 : i32, i32
  }
  func.func @transform_3(%arg0: i32) -> (i32, i32, i32) {
    %c0_i32 = arith.constant 0 : i32
    %c0_i32_0 = arith.constant 0 : i32
    %c0_i32_1 = arith.constant 0 : i32
    return %arg0, %c0_i32, %c0_i32_0 : i32, i32, i32
  }
}

</mosaic_0001>

<llo_original>
// kernel: tpu_custom_call.1
$region0: #{tpu_custom_call.1}
  #allocation0 [shape = 'u32[]', space=smem, size = 0x4, offset = 0x4, fixed_abs, tag = 'smem constant byte address 0x4 - core index']
  #allocation1 [shape = 'u32[72,128]{1,0:T(1,128)}', space=vmem, size = 0x9000, scoped, tag = 'internal scratch']
  %s0 = inlined_call_operand.vmem [shape: bf16[256,64], index: 0, kind: input, shape index: {}]
  %s1 = inlined_call_operand.vmem [shape: bf16[64,8], index: 1, kind: input, shape index: {}]
  %s2 = inlined_call_operand.vmem [shape: f32[256,4], index: 2, kind: output, shape index: {0}]
  %s3 = inlined_call_operand.vmem [shape: f32[2,3,8], index: 3, kind: output, shape index: {1}]
  %4 = xla_tuple %s2, %s3
  %s5 = sld [smem:[#allocation0]]
  $region49: #{tpu_custom_call.1} parent=0
    _
  %s7 = ssub.s32 1, %s5
  %s8 = scalar_select 0, %s7, %s5
  loop: start=0, step=1, limit=4
  $region2: #{tpu_custom_call.1} parent=0 // loop_pre_header
    _
  $region3: #{tpu_custom_call.1} parent=0 // loop_header
    %s10 = sphi 0, %s14
    %p11 = scmp.ge.s32.totalorder %s10, 4
    %s20 = sphi 0, %s22
    %s23 = sphi 0, %s20
    %s24 = sphi 0, %s23
    %s40 = sphi 0, %s24
    %s44 = sphi 0, %s44
    %s46 = sphi 0, %s44
    %s47 = sphi 0, %s46
    %s61 = sphi 0, %s47
    %s67 = sphi 0, %s69
    %s70 = sphi 0, %s67
    %s71 = sphi 0, %s70
    %s87 = sphi 0, %s71
    %s93 = sphi 0, %s95
    %s96 = sphi 0, %s93
    %s97 = sphi 0, %s96
    %s113 = sphi 0, %s97
  $region4: #{tpu_custom_call.1} parent=0 // loop_header_branch
    %13 = sbr.rel (%p11) target = $region8
  $region5: #{tpu_custom_call.1} parent=0 // loop_body
    %s15 = ssub.s32 %s10, 1
    %s16 = ssub.s32 %s10, 2
    %s17 = sadd.s32 %s10, 1
    %s18 = ssub.s32 %s10, %s17
    %p19 = scmp.eq.s32.totalorder %s18, 0
    %s21 = sadd.s32 %s20, 1
    %s22 = scalar_select %p19, %s20, %s21
    %p25 = pneg %p19
    %p26 = scmp.eq.s32.totalorder %s10, 1
    %p27 = por %p25, %p26
    %p28 = scmp.ne.s32.totalorder %s20, %s23
    %p29 = scmp.eq.s32.totalorder %s10, 0
    %p30 = por %p28, %p29
    %p31 = scmp.ne.s32.totalorder %s20, %s23
    %p32 = scmp.eq.s32.totalorder %s15, 1
    %p33 = por %p31, %p32
    %p34 = scmp.ne.s32.totalorder %s23, %s24
    %p35 = scmp.eq.s32.totalorder %s15, 0
    %p36 = por %p34, %p35
    %p37 = scmp.ne.s32.totalorder %s23, %s24
    %p38 = scmp.eq.s32.totalorder %s16, 1
    %p39 = por %p37, %p38
    %p41 = scmp.ne.s32.totalorder %s24, %s40
    %p42 = scmp.eq.s32.totalorder %s16, 0
    %p43 = por %p41, %p42
    %s45 = sadd.s32 %s44, 1
    %p48 = scmp.eq.s32.totalorder %s10, 1
    %p49 = scmp.ne.s32.totalorder %s44, %s46
    %p50 = scmp.eq.s32.totalorder %s10, 0
    %p51 = por %p49, %p50
    %p52 = scmp.ne.s32.totalorder %s44, %s46
    %p53 = scmp.eq.s32.totalorder %s15, 1
    %p54 = por %p52, %p53
    %p55 = scmp.ne.s32.totalorder %s46, %s47
    %p56 = scmp.eq.s32.totalorder %s15, 0
    %p57 = por %p55, %p56
    %p58 = scmp.ne.s32.totalorder %s46, %s47
    %p59 = scmp.eq.s32.totalorder %s16, 1
    %p60 = por %p58, %p59
    %p62 = scmp.ne.s32.totalorder %s47, %s61
    %p63 = scmp.eq.s32.totalorder %s16, 0
    %p64 = por %p62, %p63
    %s65 = ssub.s32 %s10, %s17
    %p66 = scmp.eq.s32.totalorder %s65, 0
    %s68 = sadd.s32 %s67, 1
    %s69 = scalar_select %p66, %s67, %s68
    %p72 = pneg %p66
    %p73 = scmp.eq.s32.totalorder %s10, 1
    %p74 = por %p72, %p73
    %p75 = scmp.ne.s32.totalorder %s67, %s70
    %p76 = scmp.eq.s32.totalorder %s10, 0
    %p77 = por %p75, %p76
    %p78 = scmp.ne.s32.totalorder %s67, %s70
    %p79 = scmp.eq.s32.totalorder %s15, 1
    %p80 = por %p78, %p79
    %p81 = scmp.ne.s32.totalorder %s70, %s71
    %p82 = scmp.eq.s32.totalorder %s15, 0
    %p83 = por %p81, %p82
    %p84 = scmp.ne.s32.totalorder %s70, %s71
    %p85 = scmp.eq.s32.totalorder %s16, 1
    %p86 = por %p84, %p85
    %p88 = scmp.ne.s32.totalorder %s71, %s87
    %p89 = scmp.eq.s32.totalorder %s16, 0
    %p90 = por %p88, %p89
    %s91 = ssub.s32 %s10, %s17
    %p92 = scmp.eq.s32.totalorder %s91, 0
    %s94 = sadd.s32 %s93, 1
    %s95 = scalar_select %p92, %s93, %s94
    %p98 = pneg %p92
    %p99 = scmp.eq.s32.totalorder %s10, 1
    %p100 = por %p98, %p99
    %p101 = scmp.ne.s32.totalorder %s93, %s96
    %p102 = scmp.eq.s32.totalorder %s10, 0
    %p103 = por %p101, %p102
    %p104 = scmp.ne.s32.totalorder %s93, %s96
    %p105 = scmp.eq.s32.totalorder %s15, 1
    %p106 = por %p104, %p105
    %p107 = scmp.ne.s32.totalorder %s96, %s97
    %p108 = scmp.eq.s32.totalorder %s15, 0
    %p109 = por %p107, %p108
    %p110 = scmp.ne.s32.totalorder %s96, %s97
    %p111 = scmp.eq.s32.totalorder %s16, 1
    %p112 = por %p110, %p111
    %p114 = scmp.ne.s32.totalorder %s97, %s113
    %p115 = scmp.eq.s32.totalorder %s16, 0
    %p116 = por %p114, %p115
    %p117 = scmp.le.s32.totalorder 1, %s10
    %p118 = scmp.lt.s32.totalorder %s10, 3
    %p119 = pnand %p117, %p118
    %p120 = pneg %p119
    // Predicated region
    $region9: #{tpu_custom_call.1} parent=5 // pred_check
      _
    $region10: #{tpu_custom_call.1} parent=5 // pred_check_branch
      %122 = sbr.rel (%p119) target = $region12
    $region11: #{tpu_custom_call.1} parent=5 // pred_region
      %s123 = ssub.s32 %s10, 1
      // Predicated region
      $region13: #{tpu_custom_call.1} parent=11 // pred_check
        %p124 = pneg %p57
      $region14: #{tpu_custom_call.1} parent=11 // pred_check_branch
        %126 = sbr.rel (%p124) target = $region16
      $region15: #{tpu_custom_call.1} parent=11 // pred_region
        _
      $region16: #{tpu_custom_call.1} parent=11 // pred_fallthru
        _
    $region12: #{tpu_custom_call.1} parent=5 // pred_fallthru
      _
    %p127 = scmp.lt.s32.totalorder %s10, 2
    // Predicated region
    $region17: #{tpu_custom_call.1} parent=5 // pred_check
      %p128 = pneg %p127
    $region18: #{tpu_custom_call.1} parent=5 // pred_check_branch
      %130 = sbr.rel (%p128) target = $region20
    $region19: #{tpu_custom_call.1} parent=5 // pred_region
      // Predicated region
      $region21: #{tpu_custom_call.1} parent=19 // pred_check
        %p131 = pneg %p30
      $region22: #{tpu_custom_call.1} parent=19 // pred_check_branch
        %133 = sbr.rel (%p131) target = $region24
      $region23: #{tpu_custom_call.1} parent=19 // pred_region
        %s134 = smul.u32 16, %s10
        %p135 = scmp.lt.s32.totalorder %s134, 31
        %s136 = scalar_select %p135, %s134, 31
        %s137 = smul.addr %s136, 4
        %s138 = scalar_lea.vmem %s0, %s137
        %s139 = smul.u32 16, %s10
      $region24: #{tpu_custom_call.1} parent=19 // pred_fallthru
        _
    $region20: #{tpu_custom_call.1} parent=5 // pred_fallthru
      _
    %p140 = scmp.le.s32.totalorder 1, %s10
    %p141 = scmp.lt.s32.totalorder %s10, 3
    %p142 = pnand %p140, %p141
    %p143 = pneg %p142
    // Predicated region
    $region25: #{tpu_custom_call.1} parent=5 // pred_check
      _
    $region26: #{tpu_custom_call.1} parent=5 // pred_check_branch
      %145 = sbr.rel (%p142) target = $region28
    $region27: #{tpu_custom_call.1} parent=5 // pred_region
      %s146 = ssub.s32 %s10, 1
      %s147 = smul.u32 16, %s15
      %p148 = scmp.lt.s32.totalorder %s147, 31
      %s149 = scalar_select %p148, %s147, 31
      %s150 = smul.addr %s149, 4
      %s151 = scalar_lea.vmem %s0, %s150
      %p152 = pneg %p36
      %p153 = pneg %p33
      %p154 = pneg %p57
      %p155 = pneg %p54
      %p156 = pneg %p83
      %p157 = pneg %p80
      %s158 = smul.u32 16, %s15
      %p159 = scmp.lt.s32.totalorder %s158, 31
      %s160 = scalar_select %p159, %s158, 31
      %s161 = smul.addr %s160, 8
      %s162 = scalar_lea.vmem %s2, %s161
      %p163 = pneg %p109
      %p164 = pneg %p106
      %p165 = scmp.lt.s32.totalorder %s15, 1
      %s166 = scalar_select %p165, %s15, 1
      %s167 = smul.addr %s166, 4
      %s168 = scalar_lea.vmem %s3, %s167
      %s169 = smul.u32 16, %s15
      %p170 = scmp.lt.s32.totalorder %s169, 31
      %s171 = scalar_select %p170, %s169, 31
      %s172 = smul.addr %s171, 4
      %s173 = scalar_lea.vmem %s0, %s172
      %s174 = smul.u32 16, %s15
      %s175 = smul.u32 16, %s15
      %p176 = scmp.lt.s32.totalorder %s175, 31
      %s177 = scalar_select %p176, %s175, 31
      %s178 = smul.addr %s177, 8
      %s179 = scalar_lea.vmem %s2, %s178
      %s180 = smul.u32 16, %s15
      %p181 = scmp.lt.s32.totalorder %s15, 1
      %s182 = scalar_select %p181, %s15, 1
      %s183 = smul.addr %s182, 4
      %s184 = scalar_lea.vmem %s3, %s183
      %v186 = vld [vmem:[%s173] sm:$0xf]
      %v187 = vld [vmem:[%s173 + $0x4] sm:$0xf]
      %v188 = vld [vmem:[%s173 + $0x8] sm:$0xf]
      %v189 = vld [vmem:[%s173 + $0xc] sm:$0xf]
      %v190 = vld [vmem:[%s173 + $0x10] sm:$0xf]
      %v191 = vld [vmem:[%s173 + $0x14] sm:$0xf]
      %v192 = vld [vmem:[%s173 + $0x18] sm:$0xf]
      %v193 = vld [vmem:[%s173 + $0x1c] sm:$0xf]
      %v194 = vld [vmem:[%s173 + $0x20] sm:$0xf]
      %v195 = vld [vmem:[%s173 + $0x24] sm:$0xf]
      %v196 = vld [vmem:[%s173 + $0x28] sm:$0xf]
      %v197 = vld [vmem:[%s173 + $0x2c] sm:$0xf]
      %v198 = vld [vmem:[%s173 + $0x30] sm:$0xf]
      %v199 = vld [vmem:[%s173 + $0x34] sm:$0xf]
      %v200 = vld [vmem:[%s173 + $0x38] sm:$0xf]
      %v201 = vld [vmem:[%s173 + $0x3c] sm:$0xf]
      %v202 = vld [vmem:[%s1] sm:$0xf]
      %v203 = vld [vmem:[%s1 + $0x4] sm:$0xf]
      %v204 = vld [vmem:[%s1 + $0x8] sm:$0xf]
      %v205 = vld [vmem:[%s1 + $0xc] sm:$0xf]
      %v206 = vld [vmem:[%s1 + $0x10] sm:$0xf]
      %v207 = vld [vmem:[%s1 + $0x14] sm:$0xf]
      %v208 = vld [vmem:[%s1 + $0x18] sm:$0xf]
      %v209 = vld [vmem:[%s1 + $0x1c] sm:$0xf]
      %v226 = vunpack.c.l.b16 %v186
      %v227 = vunpack.c.l.b16 %v187
      %v228 = vunpack.c.l.b16 %v188
      %v229 = vunpack.c.l.b16 %v189
      %v230 = vunpack.c.l.b16 %v190
      %v231 = vunpack.c.l.b16 %v191
      %v232 = vunpack.c.l.b16 %v192
      %v233 = vunpack.c.l.b16 %v193
      %v234 = vunpack.c.l.b16 %v194
      %v235 = vunpack.c.l.b16 %v195
      %v236 = vunpack.c.l.b16 %v196
      %v237 = vunpack.c.l.b16 %v197
      %v238 = vunpack.c.l.b16 %v198
      %v239 = vunpack.c.l.b16 %v199
      %v240 = vunpack.c.l.b16 %v200
      %v241 = vunpack.c.l.b16 %v201
      %v242 = vpack.c.b16 %v227, %v226
      %v243 = vpack.c.b16 %v229, %v228
      %v244 = vpack.c.b16 %v231, %v230
      %v245 = vpack.c.b16 %v233, %v232
      %v246 = vpack.c.b16 %v235, %v234
      %v247 = vpack.c.b16 %v237, %v236
      %v248 = vpack.c.b16 %v239, %v238
      %v249 = vpack.c.b16 %v241, %v240
      %v258 = vunpack.c.l.b16 %v202
      %v259 = vunpack.c.l.b16 %v203
      %v260 = vunpack.c.l.b16 %v204
      %v261 = vunpack.c.l.b16 %v205
      %v262 = vunpack.c.l.b16 %v206
      %v263 = vunpack.c.l.b16 %v207
      %v264 = vunpack.c.l.b16 %v208
      %v265 = vunpack.c.l.b16 %v209
      %v266 = vpack.c.b16 %v259, %v258
      %v267 = vpack.c.b16 %v261, %v260
      %v268 = vpack.c.b16 %v263, %v262
      %v269 = vpack.c.b16 %v265, %v264
      %vm274 = vcmask 523264
      %v276 = vsel %vm274, %v242, 0
      %v279 = vsel %vm274, %v243, 0
      %v282 = vsel %vm274, %v244, 0
      %v285 = vsel %vm274, %v245, 0
      %v288 = vsel %vm274, %v246, 0
      %v291 = vsel %vm274, %v247, 0
      %v294 = vsel %vm274, %v248, 0
      %v297 = vsel %vm274, %v249, 0
      %299 = vmatpush.bf16.msra.mxu0 0
      %300 = vmatpush.bf16.msra.mxu0 0
      %301 = vmatpush.bf16.msra.mxu0 0
      %302 = vmatpush.bf16.msra.mxu0 0
      %303 = vmatpush.bf16.msra.mxu0 %v269
      %304 = vmatpush.bf16.msra.mxu0 %v268
      %305 = vmatpush.bf16.msra.mxu0 %v267
      %306 = vmatpush.bf16.msra.mxu0 %v266
      %307 = vmatmul.bf16.gmra.mxu0 %v276
      %v308 = vpop.f32.mrf.mxu0
      %v309 = vadd.f32 0.0, %v308
      %v310 = vpop.f32.mrf.mxu0
      %v311 = vadd.f32 0.0, %v310
      %312 = vmatmul.bf16.gmra.mxu0 %v279
      %v313 = vpop.f32.mrf.mxu0
      %v314 = vadd.f32 0.0, %v313
      %v315 = vpop.f32.mrf.mxu0
      %v316 = vadd.f32 0.0, %v315
      %317 = vmatmul.bf16.gmra.mxu0 %v282
      %v318 = vpop.f32.mrf.mxu0
      %v319 = vadd.f32 0.0, %v318
      %v320 = vpop.f32.mrf.mxu0
      %v321 = vadd.f32 0.0, %v320
      %322 = vmatmul.bf16.gmra.mxu0 %v285
      %v323 = vpop.f32.mrf.mxu0
      %v324 = vadd.f32 0.0, %v323
      %v325 = vpop.f32.mrf.mxu0
      %v326 = vadd.f32 0.0, %v325
      %327 = vmatmul.bf16.gmra.mxu0 %v288
      %v328 = vpop.f32.mrf.mxu0
      %v329 = vadd.f32 0.0, %v328
      %v330 = vpop.f32.mrf.mxu0
      %v331 = vadd.f32 0.0, %v330
      %332 = vmatmul.bf16.gmra.mxu0 %v291
      %v333 = vpop.f32.mrf.mxu0
      %v334 = vadd.f32 0.0, %v333
      %v335 = vpop.f32.mrf.mxu0
      %v336 = vadd.f32 0.0, %v335
      %337 = vmatmul.bf16.gmra.mxu0 %v294
      %v338 = vpop.f32.mrf.mxu0
      %v339 = vadd.f32 0.0, %v338
      %v340 = vpop.f32.mrf.mxu0
      %v341 = vadd.f32 0.0, %v340
      %342 = vmatmul.bf16.gmra.mxu0 %v297
      %v343 = vpop.f32.mrf.mxu0
      %v344 = vadd.f32 0.0, %v343
      %v345 = vpop.f32.mrf.mxu0
      %v346 = vadd.f32 0.0, %v345
      %347 = vdwg.mxu0
      %vm348 = vcmask 64512
      %v349 = vsel %vm348, %v309, -inf
      %350 = vmax.xlane.f32.xlu0 %v349
      %v351 = vpop.xlane.xlu0 %350
      %v352 = vsel %vm348, %v311, -inf
      %353 = vmax.xlane.f32.xlu0 %v352
      %v354 = vpop.xlane.xlu0 %353
      %v355 = vsel %vm348, %v314, -inf
      %356 = vmax.xlane.f32.xlu0 %v355
      %v357 = vpop.xlane.xlu0 %356
      %v358 = vsel %vm348, %v316, -inf
      %359 = vmax.xlane.f32.xlu0 %v358
      %v360 = vpop.xlane.xlu0 %359
      %v361 = vsel %vm348, %v319, -inf
      %362 = vmax.xlane.f32.xlu0 %v361
      %v363 = vpop.xlane.xlu0 %362
      %v364 = vsel %vm348, %v321, -inf
      %365 = vmax.xlane.f32.xlu0 %v364
      %v366 = vpop.xlane.xlu0 %365
      %v367 = vsel %vm348, %v324, -inf
      %368 = vmax.xlane.f32.xlu0 %v367
      %v369 = vpop.xlane.xlu0 %368
      %v370 = vsel %vm348, %v326, -inf
      %371 = vmax.xlane.f32.xlu0 %v370
      %v372 = vpop.xlane.xlu0 %371
      %v373 = vsel %vm348, %v329, -inf
      %374 = vmax.xlane.f32.xlu0 %v373
      %v375 = vpop.xlane.xlu0 %374
      %v376 = vsel %vm348, %v331, -inf
      %377 = vmax.xlane.f32.xlu0 %v376
      %v378 = vpop.xlane.xlu0 %377
      %v379 = vsel %vm348, %v334, -inf
      %380 = vmax.xlane.f32.xlu0 %v379
      %v381 = vpop.xlane.xlu0 %380
      %v382 = vsel %vm348, %v336, -inf
      %383 = vmax.xlane.f32.xlu0 %v382
      %v384 = vpop.xlane.xlu0 %383
      %v385 = vsel %vm348, %v339, -inf
      %386 = vmax.xlane.f32.xlu0 %v385
      %v387 = vpop.xlane.xlu0 %386
      %v388 = vsel %vm348, %v341, -inf
      %389 = vmax.xlane.f32.xlu0 %v388
      %v390 = vpop.xlane.xlu0 %389
      %v391 = vsel %vm348, %v344, -inf
      %392 = vmax.xlane.f32.xlu0 %v391
      %v393 = vpop.xlane.xlu0 %392
      %v394 = vsel %vm348, %v346, -inf
      %395 = vmax.xlane.f32.xlu0 %v394
      %v396 = vpop.xlane.xlu0 %395
      %v397 = vsub.f32 %v309, %v351
      %v398 = vsub.f32 %v311, %v354
      %v399 = vsub.f32 %v314, %v357
      %v400 = vsub.f32 %v316, %v360
      %v401 = vsub.f32 %v319, %v363
      %v402 = vsub.f32 %v321, %v366
      %v403 = vsub.f32 %v324, %v369
      %v404 = vsub.f32 %v326, %v372
      %v405 = vsub.f32 %v329, %v375
      %v406 = vsub.f32 %v331, %v378
      %v407 = vsub.f32 %v334, %v381
      %v408 = vsub.f32 %v336, %v384
      %v409 = vsub.f32 %v339, %v387
      %v410 = vsub.f32 %v341, %v390
      %v411 = vsub.f32 %v344, %v393
      %v412 = vsub.f32 %v346, %v396
      %v413 = vmul.f32 %v397, 1.442695
      %v414 = vpow.pop %v413
      %v415 = vmul.f32 %v398, 1.442695
      %v416 = vpow.pop %v415
      %v417 = vmul.f32 %v399, 1.442695
      %v418 = vpow.pop %v417
      %v419 = vmul.f32 %v400, 1.442695
      %v420 = vpow.pop %v419
      %v421 = vmul.f32 %v401, 1.442695
      %v422 = vpow.pop %v421
      %v423 = vmul.f32 %v402, 1.442695
      %v424 = vpow.pop %v423
      %v425 = vmul.f32 %v403, 1.442695
      %v426 = vpow.pop %v425
      %v427 = vmul.f32 %v404, 1.442695
      %v428 = vpow.pop %v427
      %v429 = vmul.f32 %v405, 1.442695
      %v430 = vpow.pop %v429
      %v431 = vmul.f32 %v406, 1.442695
      %v432 = vpow.pop %v431
      %v433 = vmul.f32 %v407, 1.442695
      %v434 = vpow.pop %v433
      %v435 = vmul.f32 %v408, 1.442695
      %v436 = vpow.pop %v435
      %v437 = vmul.f32 %v409, 1.442695
      %v438 = vpow.pop %v437
      %v439 = vmul.f32 %v410, 1.442695
      %v440 = vpow.pop %v439
      %v441 = vmul.f32 %v411, 1.442695
      %v442 = vpow.pop %v441
      %v443 = vmul.f32 %v412, 1.442695
      %v444 = vpow.pop %v443
      %v445 = vsel %vm348, %v414, 0.0
      %446 = vadd.xlane.f32.xlu0 %v445
      %v447 = vpop.xlane.xlu0 %446
      %v448 = vsel %vm348, %v416, 0.0
      %449 = vadd.xlane.f32.xlu0 %v448
      %v450 = vpop.xlane.xlu0 %449
      %v451 = vsel %vm348, %v418, 0.0
      %452 = vadd.xlane.f32.xlu0 %v451
      %v453 = vpop.xlane.xlu0 %452
      %v454 = vsel %vm348, %v420, 0.0
      %455 = vadd.xlane.f32.xlu0 %v454
      %v456 = vpop.xlane.xlu0 %455
      %v457 = vsel %vm348, %v422, 0.0
      %458 = vadd.xlane.f32.xlu0 %v457
      %v459 = vpop.xlane.xlu0 %458
      %v460 = vsel %vm348, %v424, 0.0
      %461 = vadd.xlane.f32.xlu0 %v460
      %v462 = vpop.xlane.xlu0 %461
      %v463 = vsel %vm348, %v426, 0.0
      %464 = vadd.xlane.f32.xlu0 %v463
      %v465 = vpop.xlane.xlu0 %464
      %v466 = vsel %vm348, %v428, 0.0
      %467 = vadd.xlane.f32.xlu0 %v466
      %v468 = vpop.xlane.xlu0 %467
      %v469 = vsel %vm348, %v430, 0.0
      %470 = vadd.xlane.f32.xlu0 %v469
      %v471 = vpop.xlane.xlu0 %470
      %v472 = vsel %vm348, %v432, 0.0
      %473 = vadd.xlane.f32.xlu0 %v472
      %v474 = vpop.xlane.xlu0 %473
      %v475 = vsel %vm348, %v434, 0.0
      %476 = vadd.xlane.f32.xlu0 %v475
      %v477 = vpop.xlane.xlu0 %476
      %v478 = vsel %vm348, %v436, 0.0
      %479 = vadd.xlane.f32.xlu0 %v478
      %v480 = vpop.xlane.xlu0 %479
      %v481 = vsel %vm348, %v438, 0.0
      %482 = vadd.xlane.f32.xlu0 %v481
      %v483 = vpop.xlane.xlu0 %482
      %v484 = vsel %vm348, %v440, 0.0
      %485 = vadd.xlane.f32.xlu0 %v484
      %v486 = vpop.xlane.xlu0 %485
      %v487 = vsel %vm348, %v442, 0.0
      %488 = vadd.xlane.f32.xlu0 %v487
      %v489 = vpop.xlane.xlu0 %488
      %v490 = vsel %vm348, %v444, 0.0
      %491 = vadd.xlane.f32.xlu0 %v490
      %v492 = vpop.xlane.xlu0 %491
      %v493 = vrcp.pop %v447
      %v494 = vmul.f32 %v447, %v493
      %v495 = vsub.f32 1.0, %v494
      %v496 = vmul.f32 %v493, %v495
      %v497 = vadd.f32 %v493, %v496
      %vm498 = vweird.f32 %v447
      %vm499 = vweird.f32 %v493
      %vm500 = vmor %vm498, %vm499
      %v501 = vsel %vm500, %v493, %v497
      %v502 = vand.u32 2147483647, %v447
      %vm503 = vcmp.eq.f32.partialorder %v502, 8.507059e+37
      %v504 = vand.u32 %v447, 2147483648
      %v505 = vor.u32 1.1754944e-38, %v504
      %v506 = vsel %vm503, %v505, %v501
      %v507 = vmul.f32 %v414, %v506
      %v508 = vrcp.pop %v450
      %v509 = vmul.f32 %v450, %v508
      %v510 = vsub.f32 1.0, %v509
      %v511 = vmul.f32 %v508, %v510
      %v512 = vadd.f32 %v508, %v511
      %vm513 = vweird.f32 %v450
      %vm514 = vweird.f32 %v508
      %vm515 = vmor %vm513, %vm514
      %v516 = vsel %vm515, %v508, %v512
      %v517 = vand.u32 2147483647, %v450
      %vm518 = vcmp.eq.f32.partialorder %v517, 8.507059e+37
      %v519 = vand.u32 %v450, 2147483648
      %v520 = vor.u32 1.1754944e-38, %v519
      %v521 = vsel %vm518, %v520, %v516
      %v522 = vmul.f32 %v416, %v521
      %v523 = vrcp.pop %v453
      %v524 = vmul.f32 %v453, %v523
      %v525 = vsub.f32 1.0, %v524
      %v526 = vmul.f32 %v523, %v525
      %v527 = vadd.f32 %v523, %v526
      %vm528 = vweird.f32 %v453
      %vm529 = vweird.f32 %v523
      %vm530 = vmor %vm528, %vm529
      %v531 = vsel %vm530, %v523, %v527
      %v532 = vand.u32 2147483647, %v453
      %vm533 = vcmp.eq.f32.partialorder %v532, 8.507059e+37
      %v534 = vand.u32 %v453, 2147483648
      %v535 = vor.u32 1.1754944e-38, %v534
      %v536 = vsel %vm533, %v535, %v531
      %v537 = vmul.f32 %v418, %v536
      %v538 = vrcp.pop %v456
      %v539 = vmul.f32 %v456, %v538
      %v540 = vsub.f32 1.0, %v539
      %v541 = vmul.f32 %v538, %v540
      %v542 = vadd.f32 %v538, %v541
      %vm543 = vweird.f32 %v456
      %vm544 = vweird.f32 %v538
      %vm545 = vmor %vm543, %vm544
      %v546 = vsel %vm545, %v538, %v542
      %v547 = vand.u32 2147483647, %v456
      %vm548 = vcmp.eq.f32.partialorder %v547, 8.507059e+37
      %v549 = vand.u32 %v456, 2147483648
      %v550 = vor.u32 1.1754944e-38, %v549
      %v551 = vsel %vm548, %v550, %v546
      %v552 = vmul.f32 %v420, %v551
      %v553 = vrcp.pop %v459
      %v554 = vmul.f32 %v459, %v553
      %v555 = vsub.f32 1.0, %v554
      %v556 = vmul.f32 %v553, %v555
      %v557 = vadd.f32 %v553, %v556
      %vm558 = vweird.f32 %v459
      %vm559 = vweird.f32 %v553
      %vm560 = vmor %vm558, %vm559
      %v561 = vsel %vm560, %v553, %v557
      %v562 = vand.u32 2147483647, %v459
      %vm563 = vcmp.eq.f32.partialorder %v562, 8.507059e+37
      %v564 = vand.u32 %v459, 2147483648
      %v565 = vor.u32 1.1754944e-38, %v564
      %v566 = vsel %vm563, %v565, %v561
      %v567 = vmul.f32 %v422, %v566
      %v568 = vrcp.pop %v462
      %v569 = vmul.f32 %v462, %v568
      %v570 = vsub.f32 1.0, %v569
      %v571 = vmul.f32 %v568, %v570
      %v572 = vadd.f32 %v568, %v571
      %vm573 = vweird.f32 %v462
      %vm574 = vweird.f32 %v568
      %vm575 = vmor %vm573, %vm574
      %v576 = vsel %vm575, %v568, %v572
      %v577 = vand.u32 2147483647, %v462
      %vm578 = vcmp.eq.f32.partialorder %v577, 8.507059e+37
      %v579 = vand.u32 %v462, 2147483648
      %v580 = vor.u32 1.1754944e-38, %v579
      %v581 = vsel %vm578, %v580, %v576
      %v582 = vmul.f32 %v424, %v581
      %v583 = vrcp.pop %v465
      %v584 = vmul.f32 %v465, %v583
      %v585 = vsub.f32 1.0, %v584
      %v586 = vmul.f32 %v583, %v585
      %v587 = vadd.f32 %v583, %v586
      %vm588 = vweird.f32 %v465
      %vm589 = vweird.f32 %v583
      %vm590 = vmor %vm588, %vm589
      %v591 = vsel %vm590, %v583, %v587
      %v592 = vand.u32 2147483647, %v465
      %vm593 = vcmp.eq.f32.partialorder %v592, 8.507059e+37
      %v594 = vand.u32 %v465, 2147483648
      %v595 = vor.u32 1.1754944e-38, %v594
      %v596 = vsel %vm593, %v595, %v591
      %v597 = vmul.f32 %v426, %v596
      %v598 = vrcp.pop %v468
      %v599 = vmul.f32 %v468, %v598
      %v600 = vsub.f32 1.0, %v599
      %v601 = vmul.f32 %v598, %v600
      %v602 = vadd.f32 %v598, %v601
      %vm603 = vweird.f32 %v468
      %vm604 = vweird.f32 %v598
      %vm605 = vmor %vm603, %vm604
      %v606 = vsel %vm605, %v598, %v602
      %v607 = vand.u32 2147483647, %v468
      %vm608 = vcmp.eq.f32.partialorder %v607, 8.507059e+37
      %v609 = vand.u32 %v468, 2147483648
      %v610 = vor.u32 1.1754944e-38, %v609
      %v611 = vsel %vm608, %v610, %v606
      %v612 = vmul.f32 %v428, %v611
      %v613 = vrcp.pop %v471
      %v614 = vmul.f32 %v471, %v613
      %v615 = vsub.f32 1.0, %v614
      %v616 = vmul.f32 %v613, %v615
      %v617 = vadd.f32 %v613, %v616
      %vm618 = vweird.f32 %v471
      %vm619 = vweird.f32 %v613
      %vm620 = vmor %vm618, %vm619
      %v621 = vsel %vm620, %v613, %v617
      %v622 = vand.u32 2147483647, %v471
      %vm623 = vcmp.eq.f32.partialorder %v622, 8.507059e+37
      %v624 = vand.u32 %v471, 2147483648
      %v625 = vor.u32 1.1754944e-38, %v624
      %v626 = vsel %vm623, %v625, %v621
      %v627 = vmul.f32 %v430, %v626
      %v628 = vrcp.pop %v474
      %v629 = vmul.f32 %v474, %v628
      %v630 = vsub.f32 1.0, %v629
      %v631 = vmul.f32 %v628, %v630
      %v632 = vadd.f32 %v628, %v631
      %vm633 = vweird.f32 %v474
      %vm634 = vweird.f32 %v628
      %vm635 = vmor %vm633, %vm634
      %v636 = vsel %vm635, %v628, %v632
      %v637 = vand.u32 2147483647, %v474
      %vm638 = vcmp.eq.f32.partialorder %v637, 8.507059e+37
      %v639 = vand.u32 %v474, 2147483648
      %v640 = vor.u32 1.1754944e-38, %v639
      %v641 = vsel %vm638, %v640, %v636
      %v642 = vmul.f32 %v432, %v641
      %v643 = vrcp.pop %v477
      %v644 = vmul.f32 %v477, %v643
      %v645 = vsub.f32 1.0, %v644
      %v646 = vmul.f32 %v643, %v645
      %v647 = vadd.f32 %v643, %v646
      %vm648 = vweird.f32 %v477
      %vm649 = vweird.f32 %v643
      %vm650 = vmor %vm648, %vm649
      %v651 = vsel %vm650, %v643, %v647
      %v652 = vand.u32 2147483647, %v477
      %vm653 = vcmp.eq.f32.partialorder %v652, 8.507059e+37
      %v654 = vand.u32 %v477, 2147483648
      %v655 = vor.u32 1.1754944e-38, %v654
      %v656 = vsel %vm653, %v655, %v651
      %v657 = vmul.f32 %v434, %v656
      %v658 = vrcp.pop %v480
      %v659 = vmul.f32 %v480, %v658
      %v660 = vsub.f32 1.0, %v659
      %v661 = vmul.f32 %v658, %v660
      %v662 = vadd.f32 %v658, %v661
      %vm663 = vweird.f32 %v480
      %vm664 = vweird.f32 %v658
      %vm665 = vmor %vm663, %vm664
      %v666 = vsel %vm665, %v658, %v662
      %v667 = vand.u32 2147483647, %v480
      %vm668 = vcmp.eq.f32.partialorder %v667, 8.507059e+37
      %v669 = vand.u32 %v480, 2147483648
      %v670 = vor.u32 1.1754944e-38, %v669
      %v671 = vsel %vm668, %v670, %v666
      %v672 = vmul.f32 %v436, %v671
      %v673 = vrcp.pop %v483
      %v674 = vmul.f32 %v483, %v673
      %v675 = vsub.f32 1.0, %v674
      %v676 = vmul.f32 %v673, %v675
      %v677 = vadd.f32 %v673, %v676
      %vm678 = vweird.f32 %v483
      %vm679 = vweird.f32 %v673
      %vm680 = vmor %vm678, %vm679
      %v681 = vsel %vm680, %v673, %v677
      %v682 = vand.u32 2147483647, %v483
      %vm683 = vcmp.eq.f32.partialorder %v682, 8.507059e+37
      %v684 = vand.u32 %v483, 2147483648
      %v685 = vor.u32 1.1754944e-38, %v684
      %v686 = vsel %vm683, %v685, %v681
      %v687 = vmul.f32 %v438, %v686
      %v688 = vrcp.pop %v486
      %v689 = vmul.f32 %v486, %v688
      %v690 = vsub.f32 1.0, %v689
      %v691 = vmul.f32 %v688, %v690
      %v692 = vadd.f32 %v688, %v691
      %vm693 = vweird.f32 %v486
      %vm694 = vweird.f32 %v688
      %vm695 = vmor %vm693, %vm694
      %v696 = vsel %vm695, %v688, %v692
      %v697 = vand.u32 2147483647, %v486
      %vm698 = vcmp.eq.f32.partialorder %v697, 8.507059e+37
      %v699 = vand.u32 %v486, 2147483648
      %v700 = vor.u32 1.1754944e-38, %v699
      %v701 = vsel %vm698, %v700, %v696
      %v702 = vmul.f32 %v440, %v701
      %v703 = vrcp.pop %v489
      %v704 = vmul.f32 %v489, %v703
      %v705 = vsub.f32 1.0, %v704
      %v706 = vmul.f32 %v703, %v705
      %v707 = vadd.f32 %v703, %v706
      %vm708 = vweird.f32 %v489
      %vm709 = vweird.f32 %v703
      %vm710 = vmor %vm708, %vm709
      %v711 = vsel %vm710, %v703, %v707
      %v712 = vand.u32 2147483647, %v489
      %vm713 = vcmp.eq.f32.partialorder %v712, 8.507059e+37
      %v714 = vand.u32 %v489, 2147483648
      %v715 = vor.u32 1.1754944e-38, %v714
      %v716 = vsel %vm713, %v715, %v711
      %v717 = vmul.f32 %v442, %v716
      %v718 = vrcp.pop %v492
      %v719 = vmul.f32 %v492, %v718
      %v720 = vsub.f32 1.0, %v719
      %v721 = vmul.f32 %v718, %v720
      %v722 = vadd.f32 %v718, %v721
      %vm723 = vweird.f32 %v492
      %vm724 = vweird.f32 %v718
      %vm725 = vmor %vm723, %vm724
      %v726 = vsel %vm725, %v718, %v722
      %v727 = vand.u32 2147483647, %v492
      %vm728 = vcmp.eq.f32.partialorder %v727, 8.507059e+37
      %v729 = vand.u32 %v492, 2147483648
      %v730 = vor.u32 1.1754944e-38, %v729
      %v731 = vsel %vm728, %v730, %v726
      %v732 = vmul.f32 %v444, %v731
      %v733 = vlaneseq
      %v734 = vand.u32 %v733, 127
      %vm735 = vcmp.eq.f32.partialorder %v309, %v351
      %vm736 = vcmp.eq.f32.partialorder %v311, %v354
      %vm737 = vcmp.eq.f32.partialorder %v314, %v357
      %vm738 = vcmp.eq.f32.partialorder %v316, %v360
      %vm739 = vcmp.eq.f32.partialorder %v319, %v363
      %vm740 = vcmp.eq.f32.partialorder %v321, %v366
      %vm741 = vcmp.eq.f32.partialorder %v324, %v369
      %vm742 = vcmp.eq.f32.partialorder %v326, %v372
      %vm743 = vcmp.eq.f32.partialorder %v329, %v375
      %vm744 = vcmp.eq.f32.partialorder %v331, %v378
      %vm745 = vcmp.eq.f32.partialorder %v334, %v381
      %vm746 = vcmp.eq.f32.partialorder %v336, %v384
      %vm747 = vcmp.eq.f32.partialorder %v339, %v387
      %vm748 = vcmp.eq.f32.partialorder %v341, %v390
      %vm749 = vcmp.eq.f32.partialorder %v344, %v393
      %vm750 = vcmp.eq.f32.partialorder %v346, %v396
      %v751 = vsel %vm735, %v734, 8
      %v752 = vsel %vm736, %v734, 8
      %v753 = vsel %vm737, %v734, 8
      %v754 = vsel %vm738, %v734, 8
      %v755 = vsel %vm739, %v734, 8
      %v756 = vsel %vm740, %v734, 8
      %v757 = vsel %vm741, %v734, 8
      %v758 = vsel %vm742, %v734, 8
      %v759 = vsel %vm743, %v734, 8
      %v760 = vsel %vm744, %v734, 8
      %v761 = vsel %vm745, %v734, 8
      %v762 = vsel %vm746, %v734, 8
      %v763 = vsel %vm747, %v734, 8
      %v764 = vsel %vm748, %v734, 8
      %v765 = vsel %vm749, %v734, 8
      %v766 = vsel %vm750, %v734, 8
      %v767 = vsel %vm348, %v751, 2147483647
      %v768 = vand.u32 %v767, 65535
      %v769 = vshra.s32 %v767, 16
      %v770 = vcvt.s32.f32 %v768
      %v771 = vcvt.s32.f32 %v769
      %772 = vmin.xlane.f32.xlu0 %v771
      %v773 = vpop.xlane.xlu0 %772
      %vm774 = vcmp.eq.f32.partialorder %v771, %v773
      %v775 = vsel %vm774, %v770, inf
      %776 = vmin.xlane.f32.xlu0 %v775
      %v777 = vpop.xlane.xlu0 %776
      %v778 = vcvt.f32.s32 %v777
      %v779 = vcvt.f32.s32 %v773
      %v780 = vshll.u32 %v779, 16
      %v781 = vadd.s32 %v780, %v778
      %v782 = vsel %vm348, %v752, 2147483647
      %v783 = vand.u32 %v782, 65535
      %v784 = vshra.s32 %v782, 16
      %v785 = vcvt.s32.f32 %v783
      %v786 = vcvt.s32.f32 %v784
      %787 = vmin.xlane.f32.xlu0 %v786
      %v788 = vpop.xlane.xlu0 %787
      %vm789 = vcmp.eq.f32.partialorder %v786, %v788
      %v790 = vsel %vm789, %v785, inf
      %791 = vmin.xlane.f32.xlu0 %v790
      %v792 = vpop.xlane.xlu0 %791
      %v793 = vcvt.f32.s32 %v792
      %v794 = vcvt.f32.s32 %v788
      %v795 = vshll.u32 %v794, 16
      %v796 = vadd.s32 %v795, %v793
      %v797 = vsel %vm348, %v753, 2147483647
      %v798 = vand.u32 %v797, 65535
      %v799 = vshra.s32 %v797, 16
      %v800 = vcvt.s32.f32 %v798
      %v801 = vcvt.s32.f32 %v799
      %802 = vmin.xlane.f32.xlu0 %v801
      %v803 = vpop.xlane.xlu0 %802
      %vm804 = vcmp.eq.f32.partialorder %v801, %v803
      %v805 = vsel %vm804, %v800, inf
      %806 = vmin.xlane.f32.xlu0 %v805
      %v807 = vpop.xlane.xlu0 %806
      %v808 = vcvt.f32.s32 %v807
      %v809 = vcvt.f32.s32 %v803
      %v810 = vshll.u32 %v809, 16
      %v811 = vadd.s32 %v810, %v808
      %v812 = vsel %vm348, %v754, 2147483647
      %v813 = vand.u32 %v812, 65535
      %v814 = vshra.s32 %v812, 16
      %v815 = vcvt.s32.f32 %v813
      %v816 = vcvt.s32.f32 %v814
      %817 = vmin.xlane.f32.xlu0 %v816
      %v818 = vpop.xlane.xlu0 %817
      %vm819 = vcmp.eq.f32.partialorder %v816, %v818
      %v820 = vsel %vm819, %v815, inf
      %821 = vmin.xlane.f32.xlu0 %v820
      %v822 = vpop.xlane.xlu0 %821
      %v823 = vcvt.f32.s32 %v822
      %v824 = vcvt.f32.s32 %v818
      %v825 = vshll.u32 %v824, 16
      %v826 = vadd.s32 %v825, %v823
      %v827 = vsel %vm348, %v755, 2147483647
      %v828 = vand.u32 %v827, 65535
      %v829 = vshra.s32 %v827, 16
      %v830 = vcvt.s32.f32 %v828
      %v831 = vcvt.s32.f32 %v829
      %832 = vmin.xlane.f32.xlu0 %v831
      %v833 = vpop.xlane.xlu0 %832
      %vm834 = vcmp.eq.f32.partialorder %v831, %v833
      %v835 = vsel %vm834, %v830, inf
      %836 = vmin.xlane.f32.xlu0 %v835
      %v837 = vpop.xlane.xlu0 %836
      %v838 = vcvt.f32.s32 %v837
      %v839 = vcvt.f32.s32 %v833
      %v840 = vshll.u32 %v839, 16
      %v841 = vadd.s32 %v840, %v838
      %v842 = vsel %vm348, %v756, 2147483647
      %v843 = vand.u32 %v842, 65535
      %v844 = vshra.s32 %v842, 16
      %v845 = vcvt.s32.f32 %v843
      %v846 = vcvt.s32.f32 %v844
      %847 = vmin.xlane.f32.xlu0 %v846
      %v848 = vpop.xlane.xlu0 %847
      %vm849 = vcmp.eq.f32.partialorder %v846, %v848
      %v850 = vsel %vm849, %v845, inf
      %851 = vmin.xlane.f32.xlu0 %v850
      %v852 = vpop.xlane.xlu0 %851
      %v853 = vcvt.f32.s32 %v852
      %v854 = vcvt.f32.s32 %v848
      %v855 = vshll.u32 %v854, 16
      %v856 = vadd.s32 %v855, %v853
      %v857 = vsel %vm348, %v757, 2147483647
      %v858 = vand.u32 %v857, 65535
      %v859 = vshra.s32 %v857, 16
      %v860 = vcvt.s32.f32 %v858
      %v861 = vcvt.s32.f32 %v859
      %862 = vmin.xlane.f32.xlu0 %v861
      %v863 = vpop.xlane.xlu0 %862
      %vm864 = vcmp.eq.f32.partialorder %v861, %v863
      %v865 = vsel %vm864, %v860, inf
      %866 = vmin.xlane.f32.xlu0 %v865
      %v867 = vpop.xlane.xlu0 %866
      %v868 = vcvt.f32.s32 %v867
      %v869 = vcvt.f32.s32 %v863
      %v870 = vshll.u32 %v869, 16
      %v871 = vadd.s32 %v870, %v868
      %v872 = vsel %vm348, %v758, 2147483647
      %v873 = vand.u32 %v872, 65535
      %v874 = vshra.s32 %v872, 16
      %v875 = vcvt.s32.f32 %v873
      %v876 = vcvt.s32.f32 %v874
      %877 = vmin.xlane.f32.xlu0 %v876
      %v878 = vpop.xlane.xlu0 %877
      %vm879 = vcmp.eq.f32.partialorder %v876, %v878
      %v880 = vsel %vm879, %v875, inf
      %881 = vmin.xlane.f32.xlu0 %v880
      %v882 = vpop.xlane.xlu0 %881
      %v883 = vcvt.f32.s32 %v882
      %v884 = vcvt.f32.s32 %v878
      %v885 = vshll.u32 %v884, 16
      %v886 = vadd.s32 %v885, %v883
      %v887 = vsel %vm348, %v759, 2147483647
      %v888 = vand.u32 %v887, 65535
      %v889 = vshra.s32 %v887, 16
      %v890 = vcvt.s32.f32 %v888
      %v891 = vcvt.s32.f32 %v889
      %892 = vmin.xlane.f32.xlu0 %v891
      %v893 = vpop.xlane.xlu0 %892
      %vm894 = vcmp.eq.f32.partialorder %v891, %v893
      %v895 = vsel %vm894, %v890, inf
      %896 = vmin.xlane.f32.xlu0 %v895
      %v897 = vpop.xlane.xlu0 %896
      %v898 = vcvt.f32.s32 %v897
      %v899 = vcvt.f32.s32 %v893
      %v900 = vshll.u32 %v899, 16
      %v901 = vadd.s32 %v900, %v898
      %v902 = vsel %vm348, %v760, 2147483647
      %v903 = vand.u32 %v902, 65535
      %v904 = vshra.s32 %v902, 16
      %v905 = vcvt.s32.f32 %v903
      %v906 = vcvt.s32.f32 %v904
      %907 = vmin.xlane.f32.xlu0 %v906
      %v908 = vpop.xlane.xlu0 %907
      %vm909 = vcmp.eq.f32.partialorder %v906, %v908
      %v910 = vsel %vm909, %v905, inf
      %911 = vmin.xlane.f32.xlu0 %v910
      %v912 = vpop.xlane.xlu0 %911
      %v913 = vcvt.f32.s32 %v912
      %v914 = vcvt.f32.s32 %v908
      %v915 = vshll.u32 %v914, 16
      %v916 = vadd.s32 %v915, %v913
      %v917 = vsel %vm348, %v761, 2147483647
      %v918 = vand.u32 %v917, 65535
      %v919 = vshra.s32 %v917, 16
      %v920 = vcvt.s32.f32 %v918
      %v921 = vcvt.s32.f32 %v919
      %922 = vmin.xlane.f32.xlu0 %v921
      %v923 = vpop.xlane.xlu0 %922
      %vm924 = vcmp.eq.f32.partialorder %v921, %v923
      %v925 = vsel %vm924, %v920, inf
      %926 = vmin.xlane.f32.xlu0 %v925
      %v927 = vpop.xlane.xlu0 %926
      %v928 = vcvt.f32.s32 %v927
      %v929 = vcvt.f32.s32 %v923
      %v930 = vshll.u32 %v929, 16
      %v931 = vadd.s32 %v930, %v928
      %v932 = vsel %vm348, %v762, 2147483647
      %v933 = vand.u32 %v932, 65535
      %v934 = vshra.s32 %v932, 16
      %v935 = vcvt.s32.f32 %v933
      %v936 = vcvt.s32.f32 %v934
      %937 = vmin.xlane.f32.xlu0 %v936
      %v938 = vpop.xlane.xlu0 %937
      %vm939 = vcmp.eq.f32.partialorder %v936, %v938
      %v940 = vsel %vm939, %v935, inf
      %941 = vmin.xlane.f32.xlu0 %v940
      %v942 = vpop.xlane.xlu0 %941
      %v943 = vcvt.f32.s32 %v942
      %v944 = vcvt.f32.s32 %v938
      %v945 = vshll.u32 %v944, 16
      %v946 = vadd.s32 %v945, %v943
      %v947 = vsel %vm348, %v763, 2147483647
      %v948 = vand.u32 %v947, 65535
      %v949 = vshra.s32 %v947, 16
      %v950 = vcvt.s32.f32 %v948
      %v951 = vcvt.s32.f32 %v949
      %952 = vmin.xlane.f32.xlu0 %v951
      %v953 = vpop.xlane.xlu0 %952
      %vm954 = vcmp.eq.f32.partialorder %v951, %v953
      %v955 = vsel %vm954, %v950, inf
      %956 = vmin.xlane.f32.xlu0 %v955
      %v957 = vpop.xlane.xlu0 %956
      %v958 = vcvt.f32.s32 %v957
      %v959 = vcvt.f32.s32 %v953
      %v960 = vshll.u32 %v959, 16
      %v961 = vadd.s32 %v960, %v958
      %v962 = vsel %vm348, %v764, 2147483647
      %v963 = vand.u32 %v962, 65535
      %v964 = vshra.s32 %v962, 16
      %v965 = vcvt.s32.f32 %v963
      %v966 = vcvt.s32.f32 %v964
      %967 = vmin.xlane.f32.xlu0 %v966
      %v968 = vpop.xlane.xlu0 %967
      %vm969 = vcmp.eq.f32.partialorder %v966, %v968
      %v970 = vsel %vm969, %v965, inf
      %971 = vmin.xlane.f32.xlu0 %v970
      %v972 = vpop.xlane.xlu0 %971
      %v973 = vcvt.f32.s32 %v972
      %v974 = vcvt.f32.s32 %v968
      %v975 = vshll.u32 %v974, 16
      %v976 = vadd.s32 %v975, %v973
      %v977 = vsel %vm348, %v765, 2147483647
      %v978 = vand.u32 %v977, 65535
      %v979 = vshra.s32 %v977, 16
      %v980 = vcvt.s32.f32 %v978
      %v981 = vcvt.s32.f32 %v979
      %982 = vmin.xlane.f32.xlu0 %v981
      %v983 = vpop.xlane.xlu0 %982
      %vm984 = vcmp.eq.f32.partialorder %v981, %v983
      %v985 = vsel %vm984, %v980, inf
      %986 = vmin.xlane.f32.xlu0 %v985
      %v987 = vpop.xlane.xlu0 %986
      %v988 = vcvt.f32.s32 %v987
      %v989 = vcvt.f32.s32 %v983
      %v990 = vshll.u32 %v989, 16
      %v991 = vadd.s32 %v990, %v988
      %v992 = vsel %vm348, %v766, 2147483647
      %v993 = vand.u32 %v992, 65535
      %v994 = vshra.s32 %v992, 16
      %v995 = vcvt.s32.f32 %v993
      %v996 = vcvt.s32.f32 %v994
      %997 = vmin.xlane.f32.xlu0 %v996
      %v998 = vpop.xlane.xlu0 %997
      %vm999 = vcmp.eq.f32.partialorder %v996, %v998
      %v1000 = vsel %vm999, %v995, inf
      %1001 = vmin.xlane.f32.xlu0 %v1000
      %v1002 = vpop.xlane.xlu0 %1001
      %v1003 = vcvt.f32.s32 %v1002
      %v1004 = vcvt.f32.s32 %v998
      %v1005 = vshll.u32 %v1004, 16
      %v1006 = vadd.s32 %v1005, %v1003
      %vm1007 = vcmp.eq.s32.totalorder %v734, %v781
      %vm1008 = vcmp.eq.s32.totalorder %v734, %v796
      %vm1009 = vcmp.eq.s32.totalorder %v734, %v811
      %vm1010 = vcmp.eq.s32.totalorder %v734, %v826
      %vm1011 = vcmp.eq.s32.totalorder %v734, %v841
      %vm1012 = vcmp.eq.s32.totalorder %v734, %v856
      %vm1013 = vcmp.eq.s32.totalorder %v734, %v871
      %vm1014 = vcmp.eq.s32.totalorder %v734, %v886
      %vm1015 = vcmp.eq.s32.totalorder %v734, %v901
      %vm1016 = vcmp.eq.s32.totalorder %v734, %v916
      %vm1017 = vcmp.eq.s32.totalorder %v734, %v931
      %vm1018 = vcmp.eq.s32.totalorder %v734, %v946
      %vm1019 = vcmp.eq.s32.totalorder %v734, %v961
      %vm1020 = vcmp.eq.s32.totalorder %v734, %v976
      %vm1021 = vcmp.eq.s32.totalorder %v734, %v991
      %vm1022 = vcmp.eq.s32.totalorder %v734, %v1006
      %v1023 = vsel %vm1007, -inf, %v309
      %v1024 = vsel %vm1008, -inf, %v311
      %v1025 = vsel %vm1009, -inf, %v314
      %v1026 = vsel %vm1010, -inf, %v316
      %v1027 = vsel %vm1011, -inf, %v319
      %v1028 = vsel %vm1012, -inf, %v321
      %v1029 = vsel %vm1013, -inf, %v324
      %v1030 = vsel %vm1014, -inf, %v326
      %v1031 = vsel %vm1015, -inf, %v329
      %v1032 = vsel %vm1016, -inf, %v331
      %v1033 = vsel %vm1017, -inf, %v334
      %v1034 = vsel %vm1018, -inf, %v336
      %v1035 = vsel %vm1019, -inf, %v339
      %v1036 = vsel %vm1020, -inf, %v341
      %v1037 = vsel %vm1021, -inf, %v344
      %v1038 = vsel %vm1022, -inf, %v346
      %v1039 = vsel %vm348, %v1023, -inf
      %1040 = vmax.xlane.f32.xlu0 %v1039
      %v1041 = vpop.xlane.xlu0 %1040
      %v1042 = vsel %vm348, %v1024, -inf
      %1043 = vmax.xlane.f32.xlu0 %v1042
      %v1044 = vpop.xlane.xlu0 %1043
      %v1045 = vsel %vm348, %v1025, -inf
      %1046 = vmax.xlane.f32.xlu0 %v1045
      %v1047 = vpop.xlane.xlu0 %1046
      %v1048 = vsel %vm348, %v1026, -inf
      %1049 = vmax.xlane.f32.xlu0 %v1048
      %v1050 = vpop.xlane.xlu0 %1049
      %v1051 = vsel %vm348, %v1027, -inf
      %1052 = vmax.xlane.f32.xlu0 %v1051
      %v1053 = vpop.xlane.xlu0 %1052
      %v1054 = vsel %vm348, %v1028, -inf
      %1055 = vmax.xlane.f32.xlu0 %v1054
      %v1056 = vpop.xlane.xlu0 %1055
      %v1057 = vsel %vm348, %v1029, -inf
      %1058 = vmax.xlane.f32.xlu0 %v1057
      %v1059 = vpop.xlane.xlu0 %1058
      %v1060 = vsel %vm348, %v1030, -inf
      %1061 = vmax.xlane.f32.xlu0 %v1060
      %v1062 = vpop.xlane.xlu0 %1061
      %v1063 = vsel %vm348, %v1031, -inf
      %1064 = vmax.xlane.f32.xlu0 %v1063
      %v1065 = vpop.xlane.xlu0 %1064
      %v1066 = vsel %vm348, %v1032, -inf
      %1067 = vmax.xlane.f32.xlu0 %v1066
      %v1068 = vpop.xlane.xlu0 %1067
      %v1069 = vsel %vm348, %v1033, -inf
      %1070 = vmax.xlane.f32.xlu0 %v1069
      %v1071 = vpop.xlane.xlu0 %1070
      %v1072 = vsel %vm348, %v1034, -inf
      %1073 = vmax.xlane.f32.xlu0 %v1072
      %v1074 = vpop.xlane.xlu0 %1073
      %v1075 = vsel %vm348, %v1035, -inf
      %1076 = vmax.xlane.f32.xlu0 %v1075
      %v1077 = vpop.xlane.xlu0 %1076
      %v1078 = vsel %vm348, %v1036, -inf
      %1079 = vmax.xlane.f32.xlu0 %v1078
      %v1080 = vpop.xlane.xlu0 %1079
      %v1081 = vsel %vm348, %v1037, -inf
      %1082 = vmax.xlane.f32.xlu0 %v1081
      %v1083 = vpop.xlane.xlu0 %1082
      %v1084 = vsel %vm348, %v1038, -inf
      %1085 = vmax.xlane.f32.xlu0 %v1084
      %v1086 = vpop.xlane.xlu0 %1085
      %vm1087 = vcmp.eq.f32.partialorder %v1023, %v1041
      %vm1088 = vcmp.eq.f32.partialorder %v1024, %v1044
      %vm1089 = vcmp.eq.f32.partialorder %v1025, %v1047
      %vm1090 = vcmp.eq.f32.partialorder %v1026, %v1050
      %vm1091 = vcmp.eq.f32.partialorder %v1027, %v1053
      %vm1092 = vcmp.eq.f32.partialorder %v1028, %v1056
      %vm1093 = vcmp.eq.f32.partialorder %v1029, %v1059
      %vm1094 = vcmp.eq.f32.partialorder %v1030, %v1062
      %vm1095 = vcmp.eq.f32.partialorder %v1031, %v1065
      %vm1096 = vcmp.eq.f32.partialorder %v1032, %v1068
      %vm1097 = vcmp.eq.f32.partialorder %v1033, %v1071
      %vm1098 = vcmp.eq.f32.partialorder %v1034, %v1074
      %vm1099 = vcmp.eq.f32.partialorder %v1035, %v1077
      %vm1100 = vcmp.eq.f32.partialorder %v1036, %v1080
      %vm1101 = vcmp.eq.f32.partialorder %v1037, %v1083
      %vm1102 = vcmp.eq.f32.partialorder %v1038, %v1086
      %v1103 = vsel %vm1087, %v734, 8
      %v1104 = vsel %vm1088, %v734, 8
      %v1105 = vsel %vm1089, %v734, 8
      %v1106 = vsel %vm1090, %v734, 8
      %v1107 = vsel %vm1091, %v734, 8
      %v1108 = vsel %vm1092, %v734, 8
      %v1109 = vsel %vm1093, %v734, 8
      %v1110 = vsel %vm1094, %v734, 8
      %v1111 = vsel %vm1095, %v734, 8
      %v1112 = vsel %vm1096, %v734, 8
      %v1113 = vsel %vm1097, %v734, 8
      %v1114 = vsel %vm1098, %v734, 8
      %v1115 = vsel %vm1099, %v734, 8
      %v1116 = vsel %vm1100, %v734, 8
      %v1117 = vsel %vm1101, %v734, 8
      %v1118 = vsel %vm1102, %v734, 8
      %v1119 = vsel %vm348, %v1103, 2147483647
      %v1120 = vand.u32 %v1119, 65535
      %v1121 = vshra.s32 %v1119, 16
      %v1122 = vcvt.s32.f32 %v1120
      %v1123 = vcvt.s32.f32 %v1121
      %1124 = vmin.xlane.f32.xlu0 %v1123
      %v1125 = vpop.xlane.xlu0 %1124
      %vm1126 = vcmp.eq.f32.partialorder %v1123, %v1125
      %v1127 = vsel %vm1126, %v1122, inf
      %1128 = vmin.xlane.f32.xlu0 %v1127
      %v1129 = vpop.xlane.xlu0 %1128
      %v1130 = vcvt.f32.s32 %v1129
      %v1131 = vcvt.f32.s32 %v1125
      %v1132 = vshll.u32 %v1131, 16
      %v1133 = vadd.s32 %v1132, %v1130
      %v1134 = vsel %vm348, %v1104, 2147483647
      %v1135 = vand.u32 %v1134, 65535
      %v1136 = vshra.s32 %v1134, 16
      %v1137 = vcvt.s32.f32 %v1135
      %v1138 = vcvt.s32.f32 %v1136
      %1139 = vmin.xlane.f32.xlu0 %v1138
      %v1140 = vpop.xlane.xlu0 %1139
      %vm1141 = vcmp.eq.f32.partialorder %v1138, %v1140
      %v1142 = vsel %vm1141, %v1137, inf
      %1143 = vmin.xlane.f32.xlu0 %v1142
      %v1144 = vpop.xlane.xlu0 %1143
      %v1145 = vcvt.f32.s32 %v1144
      %v1146 = vcvt.f32.s32 %v1140
      %v1147 = vshll.u32 %v1146, 16
      %v1148 = vadd.s32 %v1147, %v1145
      %v1149 = vsel %vm348, %v1105, 2147483647
      %v1150 = vand.u32 %v1149, 65535
      %v1151 = vshra.s32 %v1149, 16
      %v1152 = vcvt.s32.f32 %v1150
      %v1153 = vcvt.s32.f32 %v1151
      %1154 = vmin.xlane.f32.xlu0 %v1153
      %v1155 = vpop.xlane.xlu0 %1154
      %vm1156 = vcmp.eq.f32.partialorder %v1153, %v1155
      %v1157 = vsel %vm1156, %v1152, inf
      %1158 = vmin.xlane.f32.xlu0 %v1157
      %v1159 = vpop.xlane.xlu0 %1158
      %v1160 = vcvt.f32.s32 %v1159
      %v1161 = vcvt.f32.s32 %v1155
      %v1162 = vshll.u32 %v1161, 16
      %v1163 = vadd.s32 %v1162, %v1160
      %v1164 = vsel %vm348, %v1106, 2147483647
      %v1165 = vand.u32 %v1164, 65535
      %v1166 = vshra.s32 %v1164, 16
      %v1167 = vcvt.s32.f32 %v1165
      %v1168 = vcvt.s32.f32 %v1166
      %1169 = vmin.xlane.f32.xlu0 %v1168
      %v1170 = vpop.xlane.xlu0 %1169
      %vm1171 = vcmp.eq.f32.partialorder %v1168, %v1170
      %v1172 = vsel %vm1171, %v1167, inf
      %1173 = vmin.xlane.f32.xlu0 %v1172
      %v1174 = vpop.xlane.xlu0 %1173
      %v1175 = vcvt.f32.s32 %v1174
      %v1176 = vcvt.f32.s32 %v1170
      %v1177 = vshll.u32 %v1176, 16
      %v1178 = vadd.s32 %v1177, %v1175
      %v1179 = vsel %vm348, %v1107, 2147483647
      %v1180 = vand.u32 %v1179, 65535
      %v1181 = vshra.s32 %v1179, 16
      %v1182 = vcvt.s32.f32 %v1180
      %v1183 = vcvt.s32.f32 %v1181
      %1184 = vmin.xlane.f32.xlu0 %v1183
      %v1185 = vpop.xlane.xlu0 %1184
      %vm1186 = vcmp.eq.f32.partialorder %v1183, %v1185
      %v1187 = vsel %vm1186, %v1182, inf
      %1188 = vmin.xlane.f32.xlu0 %v1187
      %v1189 = vpop.xlane.xlu0 %1188
      %v1190 = vcvt.f32.s32 %v1189
      %v1191 = vcvt.f32.s32 %v1185
      %v1192 = vshll.u32 %v1191, 16
      %v1193 = vadd.s32 %v1192, %v1190
      %v1194 = vsel %vm348, %v1108, 2147483647
      %v1195 = vand.u32 %v1194, 65535
      %v1196 = vshra.s32 %v1194, 16
      %v1197 = vcvt.s32.f32 %v1195
      %v1198 = vcvt.s32.f32 %v1196
      %1199 = vmin.xlane.f32.xlu0 %v1198
      %v1200 = vpop.xlane.xlu0 %1199
      %vm1201 = vcmp.eq.f32.partialorder %v1198, %v1200
      %v1202 = vsel %vm1201, %v1197, inf
      %1203 = vmin.xlane.f32.xlu0 %v1202
      %v1204 = vpop.xlane.xlu0 %1203
      %v1205 = vcvt.f32.s32 %v1204
      %v1206 = vcvt.f32.s32 %v1200
      %v1207 = vshll.u32 %v1206, 16
      %v1208 = vadd.s32 %v1207, %v1205
      %v1209 = vsel %vm348, %v1109, 2147483647
      %v1210 = vand.u32 %v1209, 65535
      %v1211 = vshra.s32 %v1209, 16
      %v1212 = vcvt.s32.f32 %v1210
      %v1213 = vcvt.s32.f32 %v1211
      %1214 = vmin.xlane.f32.xlu0 %v1213
      %v1215 = vpop.xlane.xlu0 %1214
      %vm1216 = vcmp.eq.f32.partialorder %v1213, %v1215
      %v1217 = vsel %vm1216, %v1212, inf
      %1218 = vmin.xlane.f32.xlu0 %v1217
      %v1219 = vpop.xlane.xlu0 %1218
      %v1220 = vcvt.f32.s32 %v1219
      %v1221 = vcvt.f32.s32 %v1215
      %v1222 = vshll.u32 %v1221, 16
      %v1223 = vadd.s32 %v1222, %v1220
      %v1224 = vsel %vm348, %v1110, 2147483647
      %v1225 = vand.u32 %v1224, 65535
      %v1226 = vshra.s32 %v1224, 16
      %v1227 = vcvt.s32.f32 %v1225
      %v1228 = vcvt.s32.f32 %v1226
      %1229 = vmin.xlane.f32.xlu0 %v1228
      %v1230 = vpop.xlane.xlu0 %1229
      %vm1231 = vcmp.eq.f32.partialorder %v1228, %v1230
      %v1232 = vsel %vm1231, %v1227, inf
      %1233 = vmin.xlane.f32.xlu0 %v1232
      %v1234 = vpop.xlane.xlu0 %1233
      %v1235 = vcvt.f32.s32 %v1234
      %v1236 = vcvt.f32.s32 %v1230
      %v1237 = vshll.u32 %v1236, 16
      %v1238 = vadd.s32 %v1237, %v1235
      %v1239 = vsel %vm348, %v1111, 2147483647
      %v1240 = vand.u32 %v1239, 65535
      %v1241 = vshra.s32 %v1239, 16
      %v1242 = vcvt.s32.f32 %v1240
      %v1243 = vcvt.s32.f32 %v1241
      %1244 = vmin.xlane.f32.xlu0 %v1243
      %v1245 = vpop.xlane.xlu0 %1244
      %vm1246 = vcmp.eq.f32.partialorder %v1243, %v1245
      %v1247 = vsel %vm1246, %v1242, inf
      %1248 = vmin.xlane.f32.xlu0 %v1247
      %v1249 = vpop.xlane.xlu0 %1248
      %v1250 = vcvt.f32.s32 %v1249
      %v1251 = vcvt.f32.s32 %v1245
      %v1252 = vshll.u32 %v1251, 16
      %v1253 = vadd.s32 %v1252, %v1250
      %v1254 = vsel %vm348, %v1112, 2147483647
      %v1255 = vand.u32 %v1254, 65535
      %v1256 = vshra.s32 %v1254, 16
      %v1257 = vcvt.s32.f32 %v1255
      %v1258 = vcvt.s32.f32 %v1256
      %1259 = vmin.xlane.f32.xlu0 %v1258
      %v1260 = vpop.xlane.xlu0 %1259
      %vm1261 = vcmp.eq.f32.partialorder %v1258, %v1260
      %v1262 = vsel %vm1261, %v1257, inf
      %1263 = vmin.xlane.f32.xlu0 %v1262
      %v1264 = vpop.xlane.xlu0 %1263
      %v1265 = vcvt.f32.s32 %v1264
      %v1266 = vcvt.f32.s32 %v1260
      %v1267 = vshll.u32 %v1266, 16
      %v1268 = vadd.s32 %v1267, %v1265
      %v1269 = vsel %vm348, %v1113, 2147483647
      %v1270 = vand.u32 %v1269, 65535
      %v1271 = vshra.s32 %v1269, 16
      %v1272 = vcvt.s32.f32 %v1270
      %v1273 = vcvt.s32.f32 %v1271
      %1274 = vmin.xlane.f32.xlu0 %v1273
      %v1275 = vpop.xlane.xlu0 %1274
      %vm1276 = vcmp.eq.f32.partialorder %v1273, %v1275
      %v1277 = vsel %vm1276, %v1272, inf
      %1278 = vmin.xlane.f32.xlu0 %v1277
      %v1279 = vpop.xlane.xlu0 %1278
      %v1280 = vcvt.f32.s32 %v1279
      %v1281 = vcvt.f32.s32 %v1275
      %v1282 = vshll.u32 %v1281, 16
      %v1283 = vadd.s32 %v1282, %v1280
      %v1284 = vsel %vm348, %v1114, 2147483647
      %v1285 = vand.u32 %v1284, 65535
      %v1286 = vshra.s32 %v1284, 16
      %v1287 = vcvt.s32.f32 %v1285
      %v1288 = vcvt.s32.f32 %v1286
      %1289 = vmin.xlane.f32.xlu0 %v1288
      %v1290 = vpop.xlane.xlu0 %1289
      %vm1291 = vcmp.eq.f32.partialorder %v1288, %v1290
      %v1292 = vsel %vm1291, %v1287, inf
      %1293 = vmin.xlane.f32.xlu0 %v1292
      %v1294 = vpop.xlane.xlu0 %1293
      %v1295 = vcvt.f32.s32 %v1294
      %v1296 = vcvt.f32.s32 %v1290
      %v1297 = vshll.u32 %v1296, 16
      %v1298 = vadd.s32 %v1297, %v1295
      %v1299 = vsel %vm348, %v1115, 2147483647
      %v1300 = vand.u32 %v1299, 65535
      %v1301 = vshra.s32 %v1299, 16
      %v1302 = vcvt.s32.f32 %v1300
      %v1303 = vcvt.s32.f32 %v1301
      %1304 = vmin.xlane.f32.xlu0 %v1303
      %v1305 = vpop.xlane.xlu0 %1304
      %vm1306 = vcmp.eq.f32.partialorder %v1303, %v1305
      %v1307 = vsel %vm1306, %v1302, inf
      %1308 = vmin.xlane.f32.xlu0 %v1307
      %v1309 = vpop.xlane.xlu0 %1308
      %v1310 = vcvt.f32.s32 %v1309
      %v1311 = vcvt.f32.s32 %v1305
      %v1312 = vshll.u32 %v1311, 16
      %v1313 = vadd.s32 %v1312, %v1310
      %v1314 = vsel %vm348, %v1116, 2147483647
      %v1315 = vand.u32 %v1314, 65535
      %v1316 = vshra.s32 %v1314, 16
      %v1317 = vcvt.s32.f32 %v1315
      %v1318 = vcvt.s32.f32 %v1316
      %1319 = vmin.xlane.f32.xlu0 %v1318
      %v1320 = vpop.xlane.xlu0 %1319
      %vm1321 = vcmp.eq.f32.partialorder %v1318, %v1320
      %v1322 = vsel %vm1321, %v1317, inf
      %1323 = vmin.xlane.f32.xlu0 %v1322
      %v1324 = vpop.xlane.xlu0 %1323
      %v1325 = vcvt.f32.s32 %v1324
      %v1326 = vcvt.f32.s32 %v1320
      %v1327 = vshll.u32 %v1326, 16
      %v1328 = vadd.s32 %v1327, %v1325
      %v1329 = vsel %vm348, %v1117, 2147483647
      %v1330 = vand.u32 %v1329, 65535
      %v1331 = vshra.s32 %v1329, 16
      %v1332 = vcvt.s32.f32 %v1330
      %v1333 = vcvt.s32.f32 %v1331
      %1334 = vmin.xlane.f32.xlu0 %v1333
      %v1335 = vpop.xlane.xlu0 %1334
      %vm1336 = vcmp.eq.f32.partialorder %v1333, %v1335
      %v1337 = vsel %vm1336, %v1332, inf
      %1338 = vmin.xlane.f32.xlu0 %v1337
      %v1339 = vpop.xlane.xlu0 %1338
      %v1340 = vcvt.f32.s32 %v1339
      %v1341 = vcvt.f32.s32 %v1335
      %v1342 = vshll.u32 %v1341, 16
      %v1343 = vadd.s32 %v1342, %v1340
      %v1344 = vsel %vm348, %v1118, 2147483647
      %v1345 = vand.u32 %v1344, 65535
      %v1346 = vshra.s32 %v1344, 16
      %v1347 = vcvt.s32.f32 %v1345
      %v1348 = vcvt.s32.f32 %v1346
      %1349 = vmin.xlane.f32.xlu0 %v1348
      %v1350 = vpop.xlane.xlu0 %1349
      %vm1351 = vcmp.eq.f32.partialorder %v1348, %v1350
      %v1352 = vsel %vm1351, %v1347, inf
      %1353 = vmin.xlane.f32.xlu0 %v1352
      %v1354 = vpop.xlane.xlu0 %1353
      %v1355 = vcvt.f32.s32 %v1354
      %v1356 = vcvt.f32.s32 %v1350
      %v1357 = vshll.u32 %v1356, 16
      %v1358 = vadd.s32 %v1357, %v1355
      %vm1359 = vcmp.eq.s32.totalorder %v734, %v1133
      %vm1360 = vcmp.eq.s32.totalorder %v734, %v1148
      %vm1361 = vcmp.eq.s32.totalorder %v734, %v1163
      %vm1362 = vcmp.eq.s32.totalorder %v734, %v1178
      %vm1363 = vcmp.eq.s32.totalorder %v734, %v1193
      %vm1364 = vcmp.eq.s32.totalorder %v734, %v1208
      %vm1365 = vcmp.eq.s32.totalorder %v734, %v1223
      %vm1366 = vcmp.eq.s32.totalorder %v734, %v1238
      %vm1367 = vcmp.eq.s32.totalorder %v734, %v1253
      %vm1368 = vcmp.eq.s32.totalorder %v734, %v1268
      %vm1369 = vcmp.eq.s32.totalorder %v734, %v1283
      %vm1370 = vcmp.eq.s32.totalorder %v734, %v1298
      %vm1371 = vcmp.eq.s32.totalorder %v734, %v1313
      %vm1372 = vcmp.eq.s32.totalorder %v734, %v1328
      %vm1373 = vcmp.eq.s32.totalorder %v734, %v1343
      %vm1374 = vcmp.eq.s32.totalorder %v734, %v1358
      %v1375 = vsel %vm1007, 1, 0
      %v1376 = vsel %vm1008, 1, 0
      %v1377 = vsel %vm1009, 1, 0
      %v1378 = vsel %vm1010, 1, 0
      %v1379 = vsel %vm1011, 1, 0
      %v1380 = vsel %vm1012, 1, 0
      %v1381 = vsel %vm1013, 1, 0
      %v1382 = vsel %vm1014, 1, 0
      %v1383 = vsel %vm1015, 1, 0
      %v1384 = vsel %vm1016, 1, 0
      %v1385 = vsel %vm1017, 1, 0
      %v1386 = vsel %vm1018, 1, 0
      %v1387 = vsel %vm1019, 1, 0
      %v1388 = vsel %vm1020, 1, 0
      %v1389 = vsel %vm1021, 1, 0
      %v1390 = vsel %vm1022, 1, 0
      %v1391 = vcvt.s32.f32 %v1375
      %v1392 = vcvt.s32.f32 %v1376
      %v1393 = vcvt.s32.f32 %v1377
      %v1394 = vcvt.s32.f32 %v1378
      %v1395 = vcvt.s32.f32 %v1379
      %v1396 = vcvt.s32.f32 %v1380
      %v1397 = vcvt.s32.f32 %v1381
      %v1398 = vcvt.s32.f32 %v1382
      %v1399 = vcvt.s32.f32 %v1383
      %v1400 = vcvt.s32.f32 %v1384
      %v1401 = vcvt.s32.f32 %v1385
      %v1402 = vcvt.s32.f32 %v1386
      %v1403 = vcvt.s32.f32 %v1387
      %v1404 = vcvt.s32.f32 %v1388
      %v1405 = vcvt.s32.f32 %v1389
      %v1406 = vcvt.s32.f32 %v1390
      %v1407 = vsel %vm1359, 1, 0
      %v1408 = vsel %vm1360, 1, 0
      %v1409 = vsel %vm1361, 1, 0
      %v1410 = vsel %vm1362, 1, 0
      %v1411 = vsel %vm1363, 1, 0
      %v1412 = vsel %vm1364, 1, 0
      %v1413 = vsel %vm1365, 1, 0
      %v1414 = vsel %vm1366, 1, 0
      %v1415 = vsel %vm1367, 1, 0
      %v1416 = vsel %vm1368, 1, 0
      %v1417 = vsel %vm1369, 1, 0
      %v1418 = vsel %vm1370, 1, 0
      %v1419 = vsel %vm1371, 1, 0
      %v1420 = vsel %vm1372, 1, 0
      %v1421 = vsel %vm1373, 1, 0
      %v1422 = vsel %vm1374, 1, 0
      %v1423 = vcvt.s32.f32 %v1407
      %v1424 = vcvt.s32.f32 %v1408
      %v1425 = vcvt.s32.f32 %v1409
      %v1426 = vcvt.s32.f32 %v1410
      %v1427 = vcvt.s32.f32 %v1411
      %v1428 = vcvt.s32.f32 %v1412
      %v1429 = vcvt.s32.f32 %v1413
      %v1430 = vcvt.s32.f32 %v1414
      %v1431 = vcvt.s32.f32 %v1415
      %v1432 = vcvt.s32.f32 %v1416
      %v1433 = vcvt.s32.f32 %v1417
      %v1434 = vcvt.s32.f32 %v1418
      %v1435 = vcvt.s32.f32 %v1419
      %v1436 = vcvt.s32.f32 %v1420
      %v1437 = vcvt.s32.f32 %v1421
      %v1438 = vcvt.s32.f32 %v1422
      %v1439 = vmul.f32 %v507, %v1391
      %v1440 = vmul.f32 %v522, %v1392
      %v1441 = vmul.f32 %v537, %v1393
      %v1442 = vmul.f32 %v552, %v1394
      %v1443 = vmul.f32 %v567, %v1395
      %v1444 = vmul.f32 %v582, %v1396
      %v1445 = vmul.f32 %v597, %v1397
      %v1446 = vmul.f32 %v612, %v1398
      %v1447 = vmul.f32 %v627, %v1399
      %v1448 = vmul.f32 %v642, %v1400
      %v1449 = vmul.f32 %v657, %v1401
      %v1450 = vmul.f32 %v672, %v1402
      %v1451 = vmul.f32 %v687, %v1403
      %v1452 = vmul.f32 %v702, %v1404
      %v1453 = vmul.f32 %v717, %v1405
      %v1454 = vmul.f32 %v732, %v1406
      %v1455 = vsel %vm348, %v1439, 0.0
      %1456 = vadd.xlane.f32.xlu0 %v1455
      %v1457 = vpop.xlane.xlu0 %1456
      %v1458 = vsel %vm348, %v1440, 0.0
      %1459 = vadd.xlane.f32.xlu0 %v1458
      %v1460 = vpop.xlane.xlu0 %1459
      %v1461 = vsel %vm348, %v1441, 0.0
      %1462 = vadd.xlane.f32.xlu0 %v1461
      %v1463 = vpop.xlane.xlu0 %1462
      %v1464 = vsel %vm348, %v1442, 0.0
      %1465 = vadd.xlane.f32.xlu0 %v1464
      %v1466 = vpop.xlane.xlu0 %1465
      %v1467 = vsel %vm348, %v1443, 0.0
      %1468 = vadd.xlane.f32.xlu0 %v1467
      %v1469 = vpop.xlane.xlu0 %1468
      %v1470 = vsel %vm348, %v1444, 0.0
      %1471 = vadd.xlane.f32.xlu0 %v1470
      %v1472 = vpop.xlane.xlu0 %1471
      %v1473 = vsel %vm348, %v1445, 0.0
      %1474 = vadd.xlane.f32.xlu0 %v1473
      %v1475 = vpop.xlane.xlu0 %1474
      %v1476 = vsel %vm348, %v1446, 0.0
      %1477 = vadd.xlane.f32.xlu0 %v1476
      %v1478 = vpop.xlane.xlu0 %1477
      %v1479 = vsel %vm348, %v1447, 0.0
      %1480 = vadd.xlane.f32.xlu0 %v1479
      %v1481 = vpop.xlane.xlu0 %1480
      %v1482 = vsel %vm348, %v1448, 0.0
      %1483 = vadd.xlane.f32.xlu0 %v1482
      %v1484 = vpop.xlane.xlu0 %1483
      %v1485 = vsel %vm348, %v1449, 0.0
      %1486 = vadd.xlane.f32.xlu0 %v1485
      %v1487 = vpop.xlane.xlu0 %1486
      %v1488 = vsel %vm348, %v1450, 0.0
      %1489 = vadd.xlane.f32.xlu0 %v1488
      %v1490 = vpop.xlane.xlu0 %1489
      %v1491 = vsel %vm348, %v1451, 0.0
      %1492 = vadd.xlane.f32.xlu0 %v1491
      %v1493 = vpop.xlane.xlu0 %1492
      %v1494 = vsel %vm348, %v1452, 0.0
      %1495 = vadd.xlane.f32.xlu0 %v1494
      %v1496 = vpop.xlane.xlu0 %1495
      %v1497 = vsel %vm348, %v1453, 0.0
      %1498 = vadd.xlane.f32.xlu0 %v1497
      %v1499 = vpop.xlane.xlu0 %1498
      %v1500 = vsel %vm348, %v1454, 0.0
      %1501 = vadd.xlane.f32.xlu0 %v1500
      %v1502 = vpop.xlane.xlu0 %1501
      %v1503 = vmul.f32 %v507, %v1423
      %v1504 = vmul.f32 %v522, %v1424
      %v1505 = vmul.f32 %v537, %v1425
      %v1506 = vmul.f32 %v552, %v1426
      %v1507 = vmul.f32 %v567, %v1427
      %v1508 = vmul.f32 %v582, %v1428
      %v1509 = vmul.f32 %v597, %v1429
      %v1510 = vmul.f32 %v612, %v1430
      %v1511 = vmul.f32 %v627, %v1431
      %v1512 = vmul.f32 %v642, %v1432
      %v1513 = vmul.f32 %v657, %v1433
      %v1514 = vmul.f32 %v672, %v1434
      %v1515 = vmul.f32 %v687, %v1435
      %v1516 = vmul.f32 %v702, %v1436
      %v1517 = vmul.f32 %v717, %v1437
      %v1518 = vmul.f32 %v732, %v1438
      %v1519 = vsel %vm348, %v1503, 0.0
      %1520 = vadd.xlane.f32.xlu0 %v1519
      %v1521 = vpop.xlane.xlu0 %1520
      %v1522 = vsel %vm348, %v1504, 0.0
      %1523 = vadd.xlane.f32.xlu0 %v1522
      %v1524 = vpop.xlane.xlu0 %1523
      %v1525 = vsel %vm348, %v1505, 0.0
      %1526 = vadd.xlane.f32.xlu0 %v1525
      %v1527 = vpop.xlane.xlu0 %1526
      %v1528 = vsel %vm348, %v1506, 0.0
      %1529 = vadd.xlane.f32.xlu0 %v1528
      %v1530 = vpop.xlane.xlu0 %1529
      %v1531 = vsel %vm348, %v1507, 0.0
      %1532 = vadd.xlane.f32.xlu0 %v1531
      %v1533 = vpop.xlane.xlu0 %1532
      %v1534 = vsel %vm348, %v1508, 0.0
      %1535 = vadd.xlane.f32.xlu0 %v1534
      %v1536 = vpop.xlane.xlu0 %1535
      %v1537 = vsel %vm348, %v1509, 0.0
      %1538 = vadd.xlane.f32.xlu0 %v1537
      %v1539 = vpop.xlane.xlu0 %1538
      %v1540 = vsel %vm348, %v1510, 0.0
      %1541 = vadd.xlane.f32.xlu0 %v1540
      %v1542 = vpop.xlane.xlu0 %1541
      %v1543 = vsel %vm348, %v1511, 0.0
      %1544 = vadd.xlane.f32.xlu0 %v1543
      %v1545 = vpop.xlane.xlu0 %1544
      %v1546 = vsel %vm348, %v1512, 0.0
      %1547 = vadd.xlane.f32.xlu0 %v1546
      %v1548 = vpop.xlane.xlu0 %1547
      %v1549 = vsel %vm348, %v1513, 0.0
      %1550 = vadd.xlane.f32.xlu0 %v1549
      %v1551 = vpop.xlane.xlu0 %1550
      %v1552 = vsel %vm348, %v1514, 0.0
      %1553 = vadd.xlane.f32.xlu0 %v1552
      %v1554 = vpop.xlane.xlu0 %1553
      %v1555 = vsel %vm348, %v1515, 0.0
      %1556 = vadd.xlane.f32.xlu0 %v1555
      %v1557 = vpop.xlane.xlu0 %1556
      %v1558 = vsel %vm348, %v1516, 0.0
      %1559 = vadd.xlane.f32.xlu0 %v1558
      %v1560 = vpop.xlane.xlu0 %1559
      %v1561 = vsel %vm348, %v1517, 0.0
      %1562 = vadd.xlane.f32.xlu0 %v1561
      %v1563 = vpop.xlane.xlu0 %1562
      %v1564 = vsel %vm348, %v1518, 0.0
      %1565 = vadd.xlane.f32.xlu0 %v1564
      %v1566 = vpop.xlane.xlu0 %1565
      %vm1567 = vcmp.eq.s32.totalorder %v734, 0
      %v1568 = vcvt.s32.f32 %v781
      %v1569 = vcvt.s32.f32 %v796
      %v1570 = vcvt.s32.f32 %v811
      %v1571 = vcvt.s32.f32 %v826
      %v1572 = vcvt.s32.f32 %v841
      %v1573 = vcvt.s32.f32 %v856
      %v1574 = vcvt.s32.f32 %v871
      %v1575 = vcvt.s32.f32 %v886
      %v1576 = vcvt.s32.f32 %v901
      %v1577 = vcvt.s32.f32 %v916
      %v1578 = vcvt.s32.f32 %v931
      %v1579 = vcvt.s32.f32 %v946
      %v1580 = vcvt.s32.f32 %v961
      %v1581 = vcvt.s32.f32 %v976
      %v1582 = vcvt.s32.f32 %v991
      %v1583 = vcvt.s32.f32 %v1006
      %vm1584 = vcmp.eq.s32.totalorder %v734, 1
      %v1585 = vcvt.s32.f32 %v1133
      %v1586 = vcvt.s32.f32 %v1148
      %v1587 = vcvt.s32.f32 %v1163
      %v1588 = vcvt.s32.f32 %v1178
      %v1589 = vcvt.s32.f32 %v1193
      %v1590 = vcvt.s32.f32 %v1208
      %v1591 = vcvt.s32.f32 %v1223
      %v1592 = vcvt.s32.f32 %v1238
      %v1593 = vcvt.s32.f32 %v1253
      %v1594 = vcvt.s32.f32 %v1268
      %v1595 = vcvt.s32.f32 %v1283
      %v1596 = vcvt.s32.f32 %v1298
      %v1597 = vcvt.s32.f32 %v1313
      %v1598 = vcvt.s32.f32 %v1328
      %v1599 = vcvt.s32.f32 %v1343
      %v1600 = vcvt.s32.f32 %v1358
      %vm1601 = vcmp.eq.s32.totalorder %v734, 2
      %v1602 = vsel %vm1601, %v1457, %v1521
      %v1603 = vsel %vm1601, %v1460, %v1524
      %v1604 = vsel %vm1601, %v1463, %v1527
      %v1605 = vsel %vm1601, %v1466, %v1530
      %v1606 = vsel %vm1601, %v1469, %v1533
      %v1607 = vsel %vm1601, %v1472, %v1536
      %v1608 = vsel %vm1601, %v1475, %v1539
      %v1609 = vsel %vm1601, %v1478, %v1542
      %v1610 = vsel %vm1601, %v1481, %v1545
      %v1611 = vsel %vm1601, %v1484, %v1548
      %v1612 = vsel %vm1601, %v1487, %v1551
      %v1613 = vsel %vm1601, %v1490, %v1554
      %v1614 = vsel %vm1601, %v1493, %v1557
      %v1615 = vsel %vm1601, %v1496, %v1560
      %v1616 = vsel %vm1601, %v1499, %v1563
      %v1617 = vsel %vm1601, %v1502, %v1566
      %v1618 = vsel %vm1584, %v1585, %v1602
      %v1619 = vsel %vm1584, %v1586, %v1603
      %v1620 = vsel %vm1584, %v1587, %v1604
      %v1621 = vsel %vm1584, %v1588, %v1605
      %v1622 = vsel %vm1584, %v1589, %v1606
      %v1623 = vsel %vm1584, %v1590, %v1607
      %v1624 = vsel %vm1584, %v1591, %v1608
      %v1625 = vsel %vm1584, %v1592, %v1609
      %v1626 = vsel %vm1584, %v1593, %v1610
      %v1627 = vsel %vm1584, %v1594, %v1611
      %v1628 = vsel %vm1584, %v1595, %v1612
      %v1629 = vsel %vm1584, %v1596, %v1613
      %v1630 = vsel %vm1584, %v1597, %v1614
      %v1631 = vsel %vm1584, %v1598, %v1615
      %v1632 = vsel %vm1584, %v1599, %v1616
      %v1633 = vsel %vm1584, %v1600, %v1617
      %v1634 = vsel %vm1567, %v1568, %v1618
      %v1635 = vsel %vm1567, %v1569, %v1619
      %v1636 = vsel %vm1567, %v1570, %v1620
      %v1637 = vsel %vm1567, %v1571, %v1621
      %v1638 = vsel %vm1567, %v1572, %v1622
      %v1639 = vsel %vm1567, %v1573, %v1623
      %v1640 = vsel %vm1567, %v1574, %v1624
      %v1641 = vsel %vm1567, %v1575, %v1625
      %v1642 = vsel %vm1567, %v1576, %v1626
      %v1643 = vsel %vm1567, %v1577, %v1627
      %v1644 = vsel %vm1567, %v1578, %v1628
      %v1645 = vsel %vm1567, %v1579, %v1629
      %v1646 = vsel %vm1567, %v1580, %v1630
      %v1647 = vsel %vm1567, %v1581, %v1631
      %v1648 = vsel %vm1567, %v1582, %v1632
      %v1649 = vsel %vm1567, %v1583, %v1633
      %vm1650 = vcmask 31744
      %1651 = vst.msk [vmem:[%s179] sm:$0xff] %vm1650, %v1634
      %1652 = vst.msk [vmem:[%s179 + $0x8] sm:$0xff] %vm1650, %v1635
      %1653 = vst.msk [vmem:[%s179 + $0x10] sm:$0xff] %vm1650, %v1636
      %1654 = vst.msk [vmem:[%s179 + $0x18] sm:$0xff] %vm1650, %v1637
      %1655 = vst.msk [vmem:[%s179 + $0x20] sm:$0xff] %vm1650, %v1638
      %1656 = vst.msk [vmem:[%s179 + $0x28] sm:$0xff] %vm1650, %v1639
      %1657 = vst.msk [vmem:[%s179 + $0x30] sm:$0xff] %vm1650, %v1640
      %1658 = vst.msk [vmem:[%s179 + $0x38] sm:$0xff] %vm1650, %v1641
      %1659 = vst.msk [vmem:[%s179 + $0x40] sm:$0xff] %vm1650, %v1642
      %1660 = vst.msk [vmem:[%s179 + $0x48] sm:$0xff] %vm1650, %v1643
      %1661 = vst.msk [vmem:[%s179 + $0x50] sm:$0xff] %vm1650, %v1644
      %1662 = vst.msk [vmem:[%s179 + $0x58] sm:$0xff] %vm1650, %v1645
      %1663 = vst.msk [vmem:[%s179 + $0x60] sm:$0xff] %vm1650, %v1646
      %1664 = vst.msk [vmem:[%s179 + $0x68] sm:$0xff] %vm1650, %v1647
      %1665 = vst.msk [vmem:[%s179 + $0x70] sm:$0xff] %vm1650, %v1648
      %1666 = vst.msk [vmem:[%s179 + $0x78] sm:$0xff] %vm1650, %v1649
      %v1667 = vsel %vm348, %v1391, 0.0
      %v1668 = vsel %vm348, %v1392, 0.0
      %v1669 = vadd.f32 %v1667, %v1668
      %v1670 = vsel %vm348, %v1393, 0.0
      %v1671 = vadd.f32 %v1669, %v1670
      %v1672 = vsel %vm348, %v1394, 0.0
      %v1673 = vadd.f32 %v1671, %v1672
      %v1674 = vsel %vm348, %v1395, 0.0
      %v1675 = vadd.f32 %v1673, %v1674
      %v1676 = vsel %vm348, %v1396, 0.0
      %v1677 = vadd.f32 %v1675, %v1676
      %v1678 = vsel %vm348, %v1397, 0.0
      %v1679 = vadd.f32 %v1677, %v1678
      %v1680 = vsel %vm348, %v1398, 0.0
      %v1681 = vadd.f32 %v1679, %v1680
      %v1682 = vsel %vm348, %v1399, 0.0
      %v1683 = vadd.f32 %v1681, %v1682
      %v1684 = vsel %vm348, %v1400, 0.0
      %v1685 = vadd.f32 %v1683, %v1684
      %v1686 = vsel %vm348, %v1401, 0.0
      %v1687 = vadd.f32 %v1685, %v1686
      %v1688 = vsel %vm348, %v1402, 0.0
      %v1689 = vadd.f32 %v1687, %v1688
      %v1690 = vsel %vm348, %v1403, 0.0
      %v1691 = vadd.f32 %v1689, %v1690
      %v1692 = vsel %vm348, %v1404, 0.0
      %v1693 = vadd.f32 %v1691, %v1692
      %v1694 = vsel %vm348, %v1405, 0.0
      %v1695 = vadd.f32 %v1693, %v1694
      %v1696 = vsel %vm348, %v1406, 0.0
      %v1697 = vadd.f32 %v1695, %v1696
      %v1698 = vrot.slane %v1697, 4
      %v1699 = vadd.f32 %v1697, %v1698
      %v1700 = vrot.slane %v1699, 2
      %v1701 = vadd.f32 %v1699, %v1700
      %v1702 = vrot.slane %v1701, 1
      %v1703 = vadd.f32 %v1701, %v1702
      %v1704 = vsel %vm348, %v1423, 0.0
      %v1705 = vsel %vm348, %v1424, 0.0
      %v1706 = vadd.f32 %v1704, %v1705
      %v1707 = vsel %vm348, %v1425, 0.0
      %v1708 = vadd.f32 %v1706, %v1707
      %v1709 = vsel %vm348, %v1426, 0.0
      %v1710 = vadd.f32 %v1708, %v1709
      %v1711 = vsel %vm348, %v1427, 0.0
      %v1712 = vadd.f32 %v1710, %v1711
      %v1713 = vsel %vm348, %v1428, 0.0
      %v1714 = vadd.f32 %v1712, %v1713
      %v1715 = vsel %vm348, %v1429, 0.0
      %v1716 = vadd.f32 %v1714, %v1715
      %v1717 = vsel %vm348, %v1430, 0.0
      %v1718 = vadd.f32 %v1716, %v1717
      %v1719 = vsel %vm348, %v1431, 0.0
      %v1720 = vadd.f32 %v1718, %v1719
      %v1721 = vsel %vm348, %v1432, 0.0
      %v1722 = vadd.f32 %v1720, %v1721
      %v1723 = vsel %vm348, %v1433, 0.0
      %v1724 = vadd.f32 %v1722, %v1723
      %v1725 = vsel %vm348, %v1434, 0.0
      %v1726 = vadd.f32 %v1724, %v1725
      %v1727 = vsel %vm348, %v1435, 0.0
      %v1728 = vadd.f32 %v1726, %v1727
      %v1729 = vsel %vm348, %v1436, 0.0
      %v1730 = vadd.f32 %v1728, %v1729
      %v1731 = vsel %vm348, %v1437, 0.0
      %v1732 = vadd.f32 %v1730, %v1731
      %v1733 = vsel %vm348, %v1438, 0.0
      %v1734 = vadd.f32 %v1732, %v1733
      %v1735 = vrot.slane %v1734, 4
      %v1736 = vadd.f32 %v1734, %v1735
      %v1737 = vrot.slane %v1736, 2
      %v1738 = vadd.f32 %v1736, %v1737
      %v1739 = vrot.slane %v1738, 1
      %v1740 = vadd.f32 %v1738, %v1739
      %v1741 = vsel %vm348, %v507, 0.0
      %v1742 = vsel %vm348, %v522, 0.0
      %v1743 = vadd.f32 %v1741, %v1742
      %v1744 = vsel %vm348, %v537, 0.0
      %v1745 = vadd.f32 %v1743, %v1744
      %v1746 = vsel %vm348, %v552, 0.0
      %v1747 = vadd.f32 %v1745, %v1746
      %v1748 = vsel %vm348, %v567, 0.0
      %v1749 = vadd.f32 %v1747, %v1748
      %v1750 = vsel %vm348, %v582, 0.0
      %v1751 = vadd.f32 %v1749, %v1750
      %v1752 = vsel %vm348, %v597, 0.0
      %v1753 = vadd.f32 %v1751, %v1752
      %v1754 = vsel %vm348, %v612, 0.0
      %v1755 = vadd.f32 %v1753, %v1754
      %v1756 = vsel %vm348, %v627, 0.0
      %v1757 = vadd.f32 %v1755, %v1756
      %v1758 = vsel %vm348, %v642, 0.0
      %v1759 = vadd.f32 %v1757, %v1758
      %v1760 = vsel %vm348, %v657, 0.0
      %v1761 = vadd.f32 %v1759, %v1760
      %v1762 = vsel %vm348, %v672, 0.0
      %v1763 = vadd.f32 %v1761, %v1762
      %v1764 = vsel %vm348, %v687, 0.0
      %v1765 = vadd.f32 %v1763, %v1764
      %v1766 = vsel %vm348, %v702, 0.0
      %v1767 = vadd.f32 %v1765, %v1766
      %v1768 = vsel %vm348, %v717, 0.0
      %v1769 = vadd.f32 %v1767, %v1768
      %v1770 = vsel %vm348, %v732, 0.0
      %v1771 = vadd.f32 %v1769, %v1770
      %v1772 = vrot.slane %v1771, 4
      %v1773 = vadd.f32 %v1771, %v1772
      %v1774 = vrot.slane %v1773, 2
      %v1775 = vadd.f32 %v1773, %v1774
      %v1776 = vrot.slane %v1775, 1
      %v1777 = vadd.f32 %v1775, %v1776
      %v1778 = vlaneseq
      %v1779 = vshrl.u32 %v1778, 7
      %vm1780 = vcmp.eq.s32.totalorder %v1779, 0
      %vm1781 = vcmp.eq.s32.totalorder %v1779, 1
      %v1782 = vsel %vm1781, %v1740, %v1777
      %v1783 = vsel %vm1780, %v1703, %v1782
      %vm1784 = vcmask 59392
      %1785 = vst.msk [vmem:[%s184] sm:$0x7] %vm1784, %v1783
      %s1786 = smul.u32 16, %s15
      %p1787 = scmp.lt.s32.totalorder %s1786, 31
      %s1788 = scalar_select %p1787, %s1786, 31
      %s1789 = smul.addr %s1788, 8
      %s1790 = scalar_lea.vmem %s2, %s1789
      %p1791 = scmp.lt.s32.totalorder %s15, 1
      %s1792 = scalar_select %p1791, %s15, 1
      %s1793 = smul.addr %s1792, 4
      %s1794 = scalar_lea.vmem %s3, %s1793
      // Predicated region
      $region29: #{tpu_custom_call.1} parent=27 // pred_check
        %p1795 = pneg %p80
      $region30: #{tpu_custom_call.1} parent=27 // pred_check_branch
        %1797 = sbr.rel (%p1795) target = $region32
      $region31: #{tpu_custom_call.1} parent=27 // pred_region
        %s1798 = smul.u32 16, %s15
      $region32: #{tpu_custom_call.1} parent=27 // pred_fallthru
        _
      // Predicated region
      $region33: #{tpu_custom_call.1} parent=27 // pred_check
        %p1799 = pneg %p106
      $region34: #{tpu_custom_call.1} parent=27 // pred_check_branch
        %1801 = sbr.rel (%p1799) target = $region36
      $region35: #{tpu_custom_call.1} parent=27 // pred_region
        _
      $region36: #{tpu_custom_call.1} parent=27 // pred_fallthru
        _
    $region28: #{tpu_custom_call.1} parent=5 // pred_fallthru
      _
    %p1802 = scmp.le.s32.totalorder 2, %s10
    // Predicated region
    $region37: #{tpu_custom_call.1} parent=5 // pred_check
      %p1803 = pneg %p1802
    $region38: #{tpu_custom_call.1} parent=5 // pred_check_branch
      %1805 = sbr.rel (%p1803) target = $region40
    $region39: #{tpu_custom_call.1} parent=5 // pred_region
      %s1806 = ssub.s32 %s10, 2
      // Predicated region
      $region41: #{tpu_custom_call.1} parent=39 // pred_check
        %p1807 = pneg %p86
      $region42: #{tpu_custom_call.1} parent=39 // pred_check_branch
        %1809 = sbr.rel (%p1807) target = $region44
      $region43: #{tpu_custom_call.1} parent=39 // pred_region
        %s1810 = smul.u32 16, %s16
        %p1811 = scmp.lt.s32.totalorder %s1810, 31
        %s1812 = scalar_select %p1811, %s1810, 31
        %s1813 = smul.addr %s1812, 8
        %s1814 = scalar_lea.vmem %s2, %s1813
      $region44: #{tpu_custom_call.1} parent=39 // pred_fallthru
        _
      // Predicated region
      $region45: #{tpu_custom_call.1} parent=39 // pred_check
        %p1815 = pneg %p112
      $region46: #{tpu_custom_call.1} parent=39 // pred_check_branch
        %1817 = sbr.rel (%p1815) target = $region48
      $region47: #{tpu_custom_call.1} parent=39 // pred_region
        %p1818 = scmp.lt.s32.totalorder %s16, 1
        %s1819 = scalar_select %p1818, %s16, 1
        %s1820 = smul.addr %s1819, 4
        %s1821 = scalar_lea.vmem %s3, %s1820
      $region48: #{tpu_custom_call.1} parent=39 // pred_fallthru
        _
    $region40: #{tpu_custom_call.1} parent=5 // pred_fallthru
      _
  $region6: #{tpu_custom_call.1} parent=0 // loop_footer
    %s14 = sadd.s32 1, %s10
  $region7: #{tpu_custom_call.1} parent=0 // loop_footer_branch
    %9 = sbr.rel target = $region3
  $region8: #{tpu_custom_call.1} parent=0 // loop_exit
    _

</llo_original>
